<compile_context>
chip_gen: v5e
topology: v5e:2x2
jax: 0.10.0
libtpu: 0.0.40
codegen_flags: <defaults>
</compile_context>

<pallas_src>
import jax
import jax.numpy as jnp
import numpy as np
from jax import lax
from jax.experimental import pallas as pl
from jax.experimental.pallas import tpu as pltpu


def _ru16(n):
    """Round up to the bf16 sublane-tile height (16 rows)."""
    return ((n + 15) // 16) * 16


def stacked_lstm_kernel(x_ref,       # (T*B, I)        bf16, time-major flattened
                        wpack_ref,   # (R, 4H+4O)      bf16  packed weights
                        bpack_ref,   # (3, 4H)         f32   packed biases
                        out_ref):    # (B, O)          f32
    B, O = out_ref.shape
    TB, I = x_ref.shape
    T = TB // B
    G1 = bpack_ref.shape[1]          # 4H
    H = G1 // 4
    G2 = 4 * O

    # ---- unpack weights / biases (static ref slices, hoisted, one-time) ----
    o1 = _ru16(I)                    # row offset of [W_hh1 | W_ih2]
    o2 = o1 + _ru16(H)               # row offset of W_hh2
    o3 = o2 + _ru16(O)               # row offset of W_lin

    w_ih1 = wpack_ref[0:I, 0:G1]            # (I, 4H)       bf16
    w1f   = wpack_ref[o1:o1 + H, :]         # (H, 4H+4O)    bf16  [W_hh1 | W_ih2]
    w_hh2 = wpack_ref[o2:o2 + O, 0:G2]      # (O, 4O)       bf16
    w_lin = wpack_ref[o3:o3 + O, 0:O]       # (O, O)        bf16

    b1    = bpack_ref[0:1, 0:G1]                              # (1, 4H) f32
    b2    = jnp.broadcast_to(bpack_ref[1:2, 0:G2], (B, G2))   # hoisted broadcast
    b_lin = bpack_ref[2:3, 0:O]                               # (1, O)  f32

    # ---- layer-1 input projection hoisted out of the recurrence ------------
    # one well-filled matmul; result (T*B, 4H) stays in vregs (no scratch).
    xw1 = jnp.dot(x_ref[...], w_ih1, preferred_element_type=jnp.float32) + b1

    # lane masks selecting the tanh ('g') gate (PyTorch order i, f, g, o)
    lane1 = lax.broadcasted_iota(jnp.int32, (B, G1), 1)
    g_mask1 = (lane1 >= 2 * H) & (lane1 < 3 * H)
    lane2 = lax.broadcasted_iota(jnp.int32, (B, G2), 1)
    g_mask2 = (lane2 >= 2 * O) & (lane2 < 3 * O)

    def cell(gates, g_mask, hid, c):
        # Single EUP push over the full gate vector:
        #   tanh(x) = 2*sigmoid(2x) - 1  → pre-scale g lanes (VPU), one
        #   sigmoid, fix up g lanes (VPU).
        pre = jnp.where(g_mask, gates + gates, gates)
        act = jax.nn.sigmoid(pre)
        act = jnp.where(g_mask, act + act - 1.0, act)
        i_g = act[:, 0 * hid:1 * hid]
        f_g = act[:, 1 * hid:2 * hid]
        g_g = act[:, 2 * hid:3 * hid]
        o_g = act[:, 3 * hid:4 * hid]
        c_new = f_g * c + i_g * g_g
        h_new = o_g * jnp.tanh(c_new)
        return h_new, c_new

    # carry: (h1(t-1) @ W_hh1, c1, h2, c2) — the recurrent gate term is carried
    # so each step issues exactly one h1-matmul (fused RHS) on the serial chain.
    g1_rec = jnp.zeros((B, G1), jnp.float32)
    c1 = jnp.zeros((B, H), jnp.float32)
    h2 = jnp.zeros((B, O), jnp.float32)
    c2 = jnp.zeros((B, O), jnp.float32)

    for t in range(T):                       # T static → full unroll, static slices
        # layer 1: gates = xW_ih1[t] + h1(t-1) @ W_hh1 (carried)
        gates1 = xw1[t * B:(t + 1) * B, :] + g1_rec
        h1, c1 = cell(gates1, g_mask1, H, c1)

        # one fused MXU push: h1(t) @ [W_hh1 | W_ih2]
        fused = jnp.dot(h1.astype(jnp.bfloat16), w1f,
                        preferred_element_type=jnp.float32)
        g1_rec = fused[:, 0:G1]                       # recurrent term for t+1

        # layer 2: small h2 @ W_hh2 matmul runs off the critical path
        gates2 = (fused[:, G1:G1 + G2]
                  + jnp.dot(h2.astype(jnp.bfloat16), w_hh2,
                            preferred_element_type=jnp.float32)
                  + b2)
        h2, c2 = cell(gates2, g_mask2, O, c2)

    # Dropout(p=0.5) is identity in eval mode.
    # TODO(synk): training-mode dropout mask (pltpu.prng_random_bits) not emitted.
    # Final Linear on the last timestep == torch view(-1,O) -> Linear -> [:, -O:]
    out_ref[...] = (jnp.dot(h2.astype(jnp.bfloat16), w_lin,
                            preferred_element_type=jnp.float32) + b_lin)


def stacked_lstm_forward(x, params):
    """x: (B, T, input_size) float32 (batch_first, like the torch module)."""
    B, T, I = x.shape
    H = params["w_hh1"].shape[1]       # torch shape (4H, H)
    O = params["w_hh2"].shape[1]       # torch shape (4O, O)
    G1, G2 = 4 * H, 4 * O
    W = G1 + G2
    assert G1 >= G2 and G1 >= O        # bias-pack width assumption

    # time-major, flattened to (T*B, I): layer-1 input projection becomes one
    # matmul inside the kernel. Weights pre-transposed to (in, out), bf16.
    x2d = jnp.transpose(x, (1, 0, 2)).reshape(T * B, I).astype(jnp.bfloat16)

    def pad2(a, rows, cols):
        return jnp.pad(a, ((0, rows - a.shape[0]), (0, cols - a.shape[1])))

    w_ih1 = params["w_ih1"].T                                       # (I, 4H)
    w1f = jnp.concatenate([params["w_hh1"].T, params["w_ih2"].T],
                          axis=1)                                   # (H, 4H+4O)
    w_hh2 = params["w_hh2"].T                                       # (O, 4O)
    w_lin = params["w_lin"].T                                       # (O, O)

    # one packed bf16 weight buffer; each segment starts on a 16-row boundary
    wpack = jnp.concatenate([
        pad2(w_ih1, _ru16(I), W),
        pad2(w1f,   _ru16(H), W),
        pad2(w_hh2, _ru16(O), W),
        pad2(w_lin, _ru16(O), W),
    ], axis=0).astype(jnp.bfloat16)

    # one packed f32 bias buffer (rows: b1, b2, b_lin; padded to 4H lanes)
    b1 = (params["b_ih1"] + params["b_hh1"]).reshape(1, G1)
    b2 = (params["b_ih2"] + params["b_hh2"]).reshape(1, G2)
    bl = params["b_lin"].reshape(1, O)
    bpack = jnp.concatenate([
        b1,
        jnp.pad(b2, ((0, 0), (0, G1 - G2))),
        jnp.pad(bl, ((0, 0), (0, G1 - O))),
    ], axis=0).astype(jnp.float32)

    vmem = pl.BlockSpec(memory_space=pltpu.MemorySpace.VMEM)
    out = pl.pallas_call(
        stacked_lstm_kernel,
        out_shape=jax.ShapeDtypeStruct((B, O), jnp.float32),
        in_specs=[vmem, vmem, vmem],
        out_specs=vmem,
    )(x2d, wpack, bpack)
    return out


# ----------------------- pure-JAX reference (torch semantics) ----------------
def _lstm_layer_ref(x, w_ih, w_hh, b_ih, b_hh):
    B, T, _ = x.shape
    H = w_hh.shape[1]

    def step(carry, x_t):
        h, c = carry
        gates = x_t @ w_ih.T + b_ih + h @ w_hh.T + b_hh
        i, f, g, o = jnp.split(gates, 4, axis=-1)
        i, f, o = jax.nn.sigmoid(i), jax.nn.sigmoid(f), jax.nn.sigmoid(o)
        g = jnp.tanh(g)
        c = f * c + i * g
        h = o * jnp.tanh(c)
        return (h, c), h

    init = (jnp.zeros((B, H), jnp.float32), jnp.zeros((B, H), jnp.float32))
    _, hs = lax.scan(step, init, jnp.transpose(x, (1, 0, 2)))
    return jnp.transpose(hs, (1, 0, 2))


def stacked_lstm_reference(x, params):
    B = x.shape[0]
    O = params["w_hh2"].shape[1]
    out = _lstm_layer_ref(x, params["w_ih1"], params["w_hh1"],
                          params["b_ih1"], params["b_hh1"])
    out = _lstm_layer_ref(out, params["w_ih2"], params["w_hh2"],
                          params["b_ih2"], params["b_hh2"])
    out = out.reshape(-1, O)
    out = out @ params["w_lin"].T + params["b_lin"]       # dropout == identity (eval)
    out = out.reshape(B, -1)
    return out[:, -O:]


# ----------------------------- parameter init --------------------------------
def init_params(key, input_size, hidden_size, output_size):
    def uni(k, shape, bound):
        return jax.random.uniform(k, shape, jnp.float32, -bound, bound)

    ks = jax.random.split(key, 10)
    kh = 1.0 / np.sqrt(hidden_size)
    ko = 1.0 / np.sqrt(output_size)
    return {
        "w_ih1": uni(ks[0], (4 * hidden_size, input_size), kh),
        "w_hh1": uni(ks[1], (4 * hidden_size, hidden_size), kh),
        "b_ih1": uni(ks[2], (4 * hidden_size,), kh),
        "b_hh1": uni(ks[3], (4 * hidden_size,), kh),
        "w_ih2": uni(ks[4], (4 * output_size, hidden_size), ko),
        "w_hh2": uni(ks[5], (4 * output_size, output_size), ko),
        "b_ih2": uni(ks[6], (4 * output_size,), ko),
        "b_hh2": uni(ks[7], (4 * output_size,), ko),
        "w_lin": uni(ks[8], (output_size, output_size), ko),
        "b_lin": uni(ks[9], (output_size,), ko),
    }


if __name__ == "__main__":
    input_size, hidden_size, output_size = 16, 32, 8
    batch_size, seq_len = 2, 8

    key = jax.random.PRNGKey(0)
    kx, kp = jax.random.split(key)
    x = jax.random.normal(kx, (batch_size, seq_len, input_size), jnp.float32)
    params = init_params(kp, input_size, hidden_size, output_size)

    out = stacked_lstm_forward(x, params)
    out = jax.block_until_ready(out)

    ref = stacked_lstm_reference(x, params)
    assert out.shape == (batch_size, output_size)
    # bf16 weights/activations on the MXU (f32 accumulate + f32 recurrence):
    # relaxed tolerance vs the full-f32 reference.
    np.testing.assert_allclose(np.asarray(out), np.asarray(ref),
                               rtol=2e-2, atol=2e-2)
    print("KERNEL_OK")
</pallas_src>

<mosaic_0001>
module attributes {stable_mosaic.version = 11 : i64} {
  func.func @stacked_lstm_kernel(%arg0: memref<16x16xbf16, #tpu.memory_space<vmem>>, %arg1: memref<80x160xbf16, #tpu.memory_space<vmem>>, %arg2: memref<3x128xf32, #tpu.memory_space<vmem>>, %arg3: memref<2x8xf32, #tpu.memory_space<vmem>>) attributes {dimension_semantics = [], scalar_prefetch = 0 : i64, scratch_operands = 0 : i64, tpu.core_type = #tpu.core_type<tc>} {
    %c0 = arith.constant 0 : index
    %c0_0 = arith.constant 0 : index
    %0 = vector.load %arg1[%c0, %c0_0] : memref<80x160xbf16, #tpu.memory_space<vmem>>, vector<16x128xbf16>
    %c16 = arith.constant 16 : index
    %c0_1 = arith.constant 0 : index
    %1 = vector.load %arg1[%c16, %c0_1] : memref<80x160xbf16, #tpu.memory_space<vmem>>, vector<32x160xbf16>
    %c48 = arith.constant 48 : index
    %c0_2 = arith.constant 0 : index
    %2 = vector.load %arg1[%c48, %c0_2] : memref<80x160xbf16, #tpu.memory_space<vmem>>, vector<8x32xbf16>
    %c64 = arith.constant 64 : index
    %c0_3 = arith.constant 0 : index
    %3 = vector.load %arg1[%c64, %c0_3] : memref<80x160xbf16, #tpu.memory_space<vmem>>, vector<8x8xbf16>
    %c0_4 = arith.constant 0 : index
    %c0_5 = arith.constant 0 : index
    %4 = vector.load %arg2[%c0_4, %c0_5] : memref<3x128xf32, #tpu.memory_space<vmem>>, vector<1x128xf32>
    %c1 = arith.constant 1 : index
    %c0_6 = arith.constant 0 : index
    %5 = vector.load %arg2[%c1, %c0_6] : memref<3x128xf32, #tpu.memory_space<vmem>>, vector<1x32xf32>
    %6 = vector.shape_cast %5 : vector<1x32xf32> to vector<1x32xf32>
    %7 = vector.broadcast %6 : vector<1x32xf32> to vector<2x32xf32>
    %c2 = arith.constant 2 : index
    %c0_7 = arith.constant 0 : index
    %8 = vector.load %arg2[%c2, %c0_7] : memref<3x128xf32, #tpu.memory_space<vmem>>, vector<1x8xf32>
    %c0_8 = arith.constant 0 : index
    %c0_9 = arith.constant 0 : index
    %9 = vector.load %arg0[%c0_8, %c0_9] : memref<16x16xbf16, #tpu.memory_space<vmem>>, vector<16x16xbf16>
    %cst = arith.constant dense<0.000000e+00> : vector<16x128xf32>
    %10 = tpu.matmul %9, %0, %cst {dimension_numbers = #tpu.dot_dimension_numbers<[1], [0], [0], [1], [0, 0, 1, 1], [], []>} : vector<16x16xbf16>, vector<16x128xbf16>, vector<16x128xf32> -> vector<16x128xf32>
    %11 = vector.broadcast %4 : vector<1x128xf32> to vector<16x128xf32>
    %12 = arith.addf %10, %11 : vector<16x128xf32>
    %13 = tpu.iota {dimensions = array<i32: 1>} : vector<2x128xi32>
    %c64_i32 = arith.constant 64 : i32
    %14 = vector.broadcast %c64_i32 : i32 to vector<2x128xi32>
    %15 = arith.cmpi sge, %13, %14 : vector<2x128xi32>
    %c96_i32 = arith.constant 96 : i32
    %16 = vector.broadcast %c96_i32 : i32 to vector<2x128xi32>
    %17 = arith.cmpi slt, %13, %16 : vector<2x128xi32>
    %18 = arith.andi %15, %17 : vector<2x128xi1>
    %19 = tpu.iota {dimensions = array<i32: 1>} : vector<2x32xi32>
    %c16_i32 = arith.constant 16 : i32
    %20 = vector.broadcast %c16_i32 : i32 to vector<2x32xi32>
    %21 = arith.cmpi sge, %19, %20 : vector<2x32xi32>
    %c24_i32 = arith.constant 24 : i32
    %22 = vector.broadcast %c24_i32 : i32 to vector<2x32xi32>
    %23 = arith.cmpi slt, %19, %22 : vector<2x32xi32>
    %24 = arith.andi %21, %23 : vector<2x32xi1>
    %cst_10 = arith.constant 0.000000e+00 : f32
    %25 = vector.broadcast %cst_10 : f32 to vector<2x128xf32>
    %cst_11 = arith.constant 0.000000e+00 : f32
    %26 = vector.broadcast %cst_11 : f32 to vector<2x32xf32>
    %cst_12 = arith.constant 0.000000e+00 : f32
    %27 = vector.broadcast %cst_12 : f32 to vector<2x8xf32>
    %cst_13 = arith.constant 0.000000e+00 : f32
    %28 = vector.broadcast %cst_13 : f32 to vector<2x8xf32>
    %29 = vector.extract_strided_slice %12 {offsets = [0, 0], sizes = [2, 128], strides = [1, 1]} : vector<16x128xf32> to vector<2x128xf32>
    %30 = arith.addf %29, %25 : vector<2x128xf32>
    %31 = arith.addf %30, %30 : vector<2x128xf32>
    %32 = arith.select %18, %31, %30 : vector<2x128xi1>, vector<2x128xf32>
    %33 = arith.negf %32 : vector<2x128xf32>
    %34 = math.exp %33 : vector<2x128xf32>
    %cst_14 = arith.constant 1.000000e+00 : f32
    %35 = vector.broadcast %cst_14 : f32 to vector<2x128xf32>
    %36 = arith.addf %35, %34 : vector<2x128xf32>
    %37 = arith.divf %35, %36 : vector<2x128xf32>
    %38 = arith.addf %37, %37 : vector<2x128xf32>
    %cst_15 = arith.constant 1.000000e+00 : f32
    %39 = vector.broadcast %cst_15 : f32 to vector<2x128xf32>
    %40 = arith.subf %38, %39 : vector<2x128xf32>
    %41 = arith.select %18, %40, %37 : vector<2x128xi1>, vector<2x128xf32>
    %42 = vector.extract_strided_slice %41 {offsets = [0, 0], sizes = [2, 32], strides = [1, 1]} : vector<2x128xf32> to vector<2x32xf32>
    %43 = vector.extract_strided_slice %41 {offsets = [0, 32], sizes = [2, 32], strides = [1, 1]} : vector<2x128xf32> to vector<2x32xf32>
    %44 = vector.extract_strided_slice %41 {offsets = [0, 64], sizes = [2, 32], strides = [1, 1]} : vector<2x128xf32> to vector<2x32xf32>
    %45 = vector.extract_strided_slice %41 {offsets = [0, 96], sizes = [2, 32], strides = [1, 1]} : vector<2x128xf32> to vector<2x32xf32>
    %46 = arith.mulf %43, %26 : vector<2x32xf32>
    %47 = arith.mulf %42, %44 : vector<2x32xf32>
    %48 = arith.addf %46, %47 : vector<2x32xf32>
    %49 = math.tanh %48 : vector<2x32xf32>
    %50 = arith.mulf %45, %49 : vector<2x32xf32>
    %51 = arith.truncf %50 : vector<2x32xf32> to vector<2x32xbf16>
    %cst_16 = arith.constant dense<0.000000e+00> : vector<2x160xf32>
    %52 = tpu.matmul %51, %1, %cst_16 {dimension_numbers = #tpu.dot_dimension_numbers<[1], [0], [0], [1], [0, 0, 1, 1], [], []>} : vector<2x32xbf16>, vector<32x160xbf16>, vector<2x160xf32> -> vector<2x160xf32>
    %53 = vector.extract_strided_slice %52 {offsets = [0, 0], sizes = [2, 128], strides = [1, 1]} : vector<2x160xf32> to vector<2x128xf32>
    %54 = vector.extract_strided_slice %52 {offsets = [0, 128], sizes = [2, 32], strides = [1, 1]} : vector<2x160xf32> to vector<2x32xf32>
    %55 = arith.truncf %27 : vector<2x8xf32> to vector<2x8xbf16>
    %cst_17 = arith.constant dense<0.000000e+00> : vector<2x32xf32>
    %56 = tpu.matmul %55, %2, %cst_17 {dimension_numbers = #tpu.dot_dimension_numbers<[1], [0], [0], [1], [0, 0, 1, 1], [], []>} : vector<2x8xbf16>, vector<8x32xbf16>, vector<2x32xf32> -> vector<2x32xf32>
    %57 = arith.addf %54, %56 : vector<2x32xf32>
    %58 = arith.addf %57, %7 : vector<2x32xf32>
    %59 = arith.addf %58, %58 : vector<2x32xf32>
    %60 = arith.select %24, %59, %58 : vector<2x32xi1>, vector<2x32xf32>
    %61 = arith.negf %60 : vector<2x32xf32>
    %62 = math.exp %61 : vector<2x32xf32>
    %cst_18 = arith.constant 1.000000e+00 : f32
    %63 = vector.broadcast %cst_18 : f32 to vector<2x32xf32>
    %64 = arith.addf %63, %62 : vector<2x32xf32>
    %65 = arith.divf %63, %64 : vector<2x32xf32>
    %66 = arith.addf %65, %65 : vector<2x32xf32>
    %cst_19 = arith.constant 1.000000e+00 : f32
    %67 = vector.broadcast %cst_19 : f32 to vector<2x32xf32>
    %68 = arith.subf %66, %67 : vector<2x32xf32>
    %69 = arith.select %24, %68, %65 : vector<2x32xi1>, vector<2x32xf32>
    %70 = vector.extract_strided_slice %69 {offsets = [0, 0], sizes = [2, 8], strides = [1, 1]} : vector<2x32xf32> to vector<2x8xf32>
    %71 = vector.extract_strided_slice %69 {offsets = [0, 8], sizes = [2, 8], strides = [1, 1]} : vector<2x32xf32> to vector<2x8xf32>
    %72 = vector.extract_strided_slice %69 {offsets = [0, 16], sizes = [2, 8], strides = [1, 1]} : vector<2x32xf32> to vector<2x8xf32>
    %73 = vector.extract_strided_slice %69 {offsets = [0, 24], sizes = [2, 8], strides = [1, 1]} : vector<2x32xf32> to vector<2x8xf32>
    %74 = arith.mulf %71, %28 : vector<2x8xf32>
    %75 = arith.mulf %70, %72 : vector<2x8xf32>
    %76 = arith.addf %74, %75 : vector<2x8xf32>
    %77 = math.tanh %76 : vector<2x8xf32>
    %78 = arith.mulf %73, %77 : vector<2x8xf32>
    %79 = vector.extract_strided_slice %12 {offsets = [2, 0], sizes = [2, 128], strides = [1, 1]} : vector<16x128xf32> to vector<2x128xf32>
    %80 = arith.addf %79, %53 : vector<2x128xf32>
    %81 = arith.addf %80, %80 : vector<2x128xf32>
    %82 = arith.select %18, %81, %80 : vector<2x128xi1>, vector<2x128xf32>
    %83 = arith.negf %82 : vector<2x128xf32>
    %84 = math.exp %83 : vector<2x128xf32>
    %cst_20 = arith.constant 1.000000e+00 : f32
    %85 = vector.broadcast %cst_20 : f32 to vector<2x128xf32>
    %86 = arith.addf %85, %84 : vector<2x128xf32>
    %87 = arith.divf %85, %86 : vector<2x128xf32>
    %88 = arith.addf %87, %87 : vector<2x128xf32>
    %cst_21 = arith.constant 1.000000e+00 : f32
    %89 = vector.broadcast %cst_21 : f32 to vector<2x128xf32>
    %90 = arith.subf %88, %89 : vector<2x128xf32>
    %91 = arith.select %18, %90, %87 : vector<2x128xi1>, vector<2x128xf32>
    %92 = vector.extract_strided_slice %91 {offsets = [0, 0], sizes = [2, 32], strides = [1, 1]} : vector<2x128xf32> to vector<2x32xf32>
    %93 = vector.extract_strided_slice %91 {offsets = [0, 32], sizes = [2, 32], strides = [1, 1]} : vector<2x128xf32> to vector<2x32xf32>
    %94 = vector.extract_strided_slice %91 {offsets = [0, 64], sizes = [2, 32], strides = [1, 1]} : vector<2x128xf32> to vector<2x32xf32>
    %95 = vector.extract_strided_slice %91 {offsets = [0, 96], sizes = [2, 32], strides = [1, 1]} : vector<2x128xf32> to vector<2x32xf32>
    %96 = arith.mulf %93, %48 : vector<2x32xf32>
    %97 = arith.mulf %92, %94 : vector<2x32xf32>
    %98 = arith.addf %96, %97 : vector<2x32xf32>
    %99 = math.tanh %98 : vector<2x32xf32>
    %100 = arith.mulf %95, %99 : vector<2x32xf32>
    %101 = arith.truncf %100 : vector<2x32xf32> to vector<2x32xbf16>
    %cst_22 = arith.constant dense<0.000000e+00> : vector<2x160xf32>
    %102 = tpu.matmul %101, %1, %cst_22 {dimension_numbers = #tpu.dot_dimension_numbers<[1], [0], [0], [1], [0, 0, 1, 1], [], []>} : vector<2x32xbf16>, vector<32x160xbf16>, vector<2x160xf32> -> vector<2x160xf32>
    %103 = vector.extract_strided_slice %102 {offsets = [0, 0], sizes = [2, 128], strides = [1, 1]} : vector<2x160xf32> to vector<2x128xf32>
    %104 = vector.extract_strided_slice %102 {offsets = [0, 128], sizes = [2, 32], strides = [1, 1]} : vector<2x160xf32> to vector<2x32xf32>
    %105 = arith.truncf %78 : vector<2x8xf32> to vector<2x8xbf16>
    %cst_23 = arith.constant dense<0.000000e+00> : vector<2x32xf32>
    %106 = tpu.matmul %105, %2, %cst_23 {dimension_numbers = #tpu.dot_dimension_numbers<[1], [0], [0], [1], [0, 0, 1, 1], [], []>} : vector<2x8xbf16>, vector<8x32xbf16>, vector<2x32xf32> -> vector<2x32xf32>
    %107 = arith.addf %104, %106 : vector<2x32xf32>
    %108 = arith.addf %107, %7 : vector<2x32xf32>
    %109 = arith.addf %108, %108 : vector<2x32xf32>
    %110 = arith.select %24, %109, %108 : vector<2x32xi1>, vector<2x32xf32>
    %111 = arith.negf %110 : vector<2x32xf32>
    %112 = math.exp %111 : vector<2x32xf32>
    %cst_24 = arith.constant 1.000000e+00 : f32
    %113 = vector.broadcast %cst_24 : f32 to vector<2x32xf32>
    %114 = arith.addf %113, %112 : vector<2x32xf32>
    %115 = arith.divf %113, %114 : vector<2x32xf32>
    %116 = arith.addf %115, %115 : vector<2x32xf32>
    %cst_25 = arith.constant 1.000000e+00 : f32
    %117 = vector.broadcast %cst_25 : f32 to vector<2x32xf32>
    %118 = arith.subf %116, %117 : vector<2x32xf32>
    %119 = arith.select %24, %118, %115 : vector<2x32xi1>, vector<2x32xf32>
    %120 = vector.extract_strided_slice %119 {offsets = [0, 0], sizes = [2, 8], strides = [1, 1]} : vector<2x32xf32> to vector<2x8xf32>
    %121 = vector.extract_strided_slice %119 {offsets = [0, 8], sizes = [2, 8], strides = [1, 1]} : vector<2x32xf32> to vector<2x8xf32>
    %122 = vector.extract_strided_slice %119 {offsets = [0, 16], sizes = [2, 8], strides = [1, 1]} : vector<2x32xf32> to vector<2x8xf32>
    %123 = vector.extract_strided_slice %119 {offsets = [0, 24], sizes = [2, 8], strides = [1, 1]} : vector<2x32xf32> to vector<2x8xf32>
    %124 = arith.mulf %121, %76 : vector<2x8xf32>
    %125 = arith.mulf %120, %122 : vector<2x8xf32>
    %126 = arith.addf %124, %125 : vector<2x8xf32>
    %127 = math.tanh %126 : vector<2x8xf32>
    %128 = arith.mulf %123, %127 : vector<2x8xf32>
    %129 = vector.extract_strided_slice %12 {offsets = [4, 0], sizes = [2, 128], strides = [1, 1]} : vector<16x128xf32> to vector<2x128xf32>
    %130 = arith.addf %129, %103 : vector<2x128xf32>
    %131 = arith.addf %130, %130 : vector<2x128xf32>
    %132 = arith.select %18, %131, %130 : vector<2x128xi1>, vector<2x128xf32>
    %133 = arith.negf %132 : vector<2x128xf32>
    %134 = math.exp %133 : vector<2x128xf32>
    %cst_26 = arith.constant 1.000000e+00 : f32
    %135 = vector.broadcast %cst_26 : f32 to vector<2x128xf32>
    %136 = arith.addf %135, %134 : vector<2x128xf32>
    %137 = arith.divf %135, %136 : vector<2x128xf32>
    %138 = arith.addf %137, %137 : vector<2x128xf32>
    %cst_27 = arith.constant 1.000000e+00 : f32
    %139 = vector.broadcast %cst_27 : f32 to vector<2x128xf32>
    %140 = arith.subf %138, %139 : vector<2x128xf32>
    %141 = arith.select %18, %140, %137 : vector<2x128xi1>, vector<2x128xf32>
    %142 = vector.extract_strided_slice %141 {offsets = [0, 0], sizes = [2, 32], strides = [1, 1]} : vector<2x128xf32> to vector<2x32xf32>
    %143 = vector.extract_strided_slice %141 {offsets = [0, 32], sizes = [2, 32], strides = [1, 1]} : vector<2x128xf32> to vector<2x32xf32>
    %144 = vector.extract_strided_slice %141 {offsets = [0, 64], sizes = [2, 32], strides = [1, 1]} : vector<2x128xf32> to vector<2x32xf32>
    %145 = vector.extract_strided_slice %141 {offsets = [0, 96], sizes = [2, 32], strides = [1, 1]} : vector<2x128xf32> to vector<2x32xf32>
    %146 = arith.mulf %143, %98 : vector<2x32xf32>
    %147 = arith.mulf %142, %144 : vector<2x32xf32>
    %148 = arith.addf %146, %147 : vector<2x32xf32>
    %149 = math.tanh %148 : vector<2x32xf32>
    %150 = arith.mulf %145, %149 : vector<2x32xf32>
    %151 = arith.truncf %150 : vector<2x32xf32> to vector<2x32xbf16>
    %cst_28 = arith.constant dense<0.000000e+00> : vector<2x160xf32>
    %152 = tpu.matmul %151, %1, %cst_28 {dimension_numbers = #tpu.dot_dimension_numbers<[1], [0], [0], [1], [0, 0, 1, 1], [], []>} : vector<2x32xbf16>, vector<32x160xbf16>, vector<2x160xf32> -> vector<2x160xf32>
    %153 = vector.extract_strided_slice %152 {offsets = [0, 0], sizes = [2, 128], strides = [1, 1]} : vector<2x160xf32> to vector<2x128xf32>
    %154 = vector.extract_strided_slice %152 {offsets = [0, 128], sizes = [2, 32], strides = [1, 1]} : vector<2x160xf32> to vector<2x32xf32>
    %155 = arith.truncf %128 : vector<2x8xf32> to vector<2x8xbf16>
    %cst_29 = arith.constant dense<0.000000e+00> : vector<2x32xf32>
    %156 = tpu.matmul %155, %2, %cst_29 {dimension_numbers = #tpu.dot_dimension_numbers<[1], [0], [0], [1], [0, 0, 1, 1], [], []>} : vector<2x8xbf16>, vector<8x32xbf16>, vector<2x32xf32> -> vector<2x32xf32>
    %157 = arith.addf %154, %156 : vector<2x32xf32>
    %158 = arith.addf %157, %7 : vector<2x32xf32>
    %159 = arith.addf %158, %158 : vector<2x32xf32>
    %160 = arith.select %24, %159, %158 : vector<2x32xi1>, vector<2x32xf32>
    %161 = arith.negf %160 : vector<2x32xf32>
    %162 = math.exp %161 : vector<2x32xf32>
    %cst_30 = arith.constant 1.000000e+00 : f32
    %163 = vector.broadcast %cst_30 : f32 to vector<2x32xf32>
    %164 = arith.addf %163, %162 : vector<2x32xf32>
    %165 = arith.divf %163, %164 : vector<2x32xf32>
    %166 = arith.addf %165, %165 : vector<2x32xf32>
    %cst_31 = arith.constant 1.000000e+00 : f32
    %167 = vector.broadcast %cst_31 : f32 to vector<2x32xf32>
    %168 = arith.subf %166, %167 : vector<2x32xf32>
    %169 = arith.select %24, %168, %165 : vector<2x32xi1>, vector<2x32xf32>
    %170 = vector.extract_strided_slice %169 {offsets = [0, 0], sizes = [2, 8], strides = [1, 1]} : vector<2x32xf32> to vector<2x8xf32>
    %171 = vector.extract_strided_slice %169 {offsets = [0, 8], sizes = [2, 8], strides = [1, 1]} : vector<2x32xf32> to vector<2x8xf32>
    %172 = vector.extract_strided_slice %169 {offsets = [0, 16], sizes = [2, 8], strides = [1, 1]} : vector<2x32xf32> to vector<2x8xf32>
    %173 = vector.extract_strided_slice %169 {offsets = [0, 24], sizes = [2, 8], strides = [1, 1]} : vector<2x32xf32> to vector<2x8xf32>
    %174 = arith.mulf %171, %126 : vector<2x8xf32>
    %175 = arith.mulf %170, %172 : vector<2x8xf32>
    %176 = arith.addf %174, %175 : vector<2x8xf32>
    %177 = math.tanh %176 : vector<2x8xf32>
    %178 = arith.mulf %173, %177 : vector<2x8xf32>
    %179 = vector.extract_strided_slice %12 {offsets = [6, 0], sizes = [2, 128], strides = [1, 1]} : vector<16x128xf32> to vector<2x128xf32>
    %180 = arith.addf %179, %153 : vector<2x128xf32>
    %181 = arith.addf %180, %180 : vector<2x128xf32>
    %182 = arith.select %18, %181, %180 : vector<2x128xi1>, vector<2x128xf32>
    %183 = arith.negf %182 : vector<2x128xf32>
    %184 = math.exp %183 : vector<2x128xf32>
    %cst_32 = arith.constant 1.000000e+00 : f32
    %185 = vector.broadcast %cst_32 : f32 to vector<2x128xf32>
    %186 = arith.addf %185, %184 : vector<2x128xf32>
    %187 = arith.divf %185, %186 : vector<2x128xf32>
    %188 = arith.addf %187, %187 : vector<2x128xf32>
    %cst_33 = arith.constant 1.000000e+00 : f32
    %189 = vector.broadcast %cst_33 : f32 to vector<2x128xf32>
    %190 = arith.subf %188, %189 : vector<2x128xf32>
    %191 = arith.select %18, %190, %187 : vector<2x128xi1>, vector<2x128xf32>
    %192 = vector.extract_strided_slice %191 {offsets = [0, 0], sizes = [2, 32], strides = [1, 1]} : vector<2x128xf32> to vector<2x32xf32>
    %193 = vector.extract_strided_slice %191 {offsets = [0, 32], sizes = [2, 32], strides = [1, 1]} : vector<2x128xf32> to vector<2x32xf32>
    %194 = vector.extract_strided_slice %191 {offsets = [0, 64], sizes = [2, 32], strides = [1, 1]} : vector<2x128xf32> to vector<2x32xf32>
    %195 = vector.extract_strided_slice %191 {offsets = [0, 96], sizes = [2, 32], strides = [1, 1]} : vector<2x128xf32> to vector<2x32xf32>
    %196 = arith.mulf %193, %148 : vector<2x32xf32>
    %197 = arith.mulf %192, %194 : vector<2x32xf32>
    %198 = arith.addf %196, %197 : vector<2x32xf32>
    %199 = math.tanh %198 : vector<2x32xf32>
    %200 = arith.mulf %195, %199 : vector<2x32xf32>
    %201 = arith.truncf %200 : vector<2x32xf32> to vector<2x32xbf16>
    %cst_34 = arith.constant dense<0.000000e+00> : vector<2x160xf32>
    %202 = tpu.matmul %201, %1, %cst_34 {dimension_numbers = #tpu.dot_dimension_numbers<[1], [0], [0], [1], [0, 0, 1, 1], [], []>} : vector<2x32xbf16>, vector<32x160xbf16>, vector<2x160xf32> -> vector<2x160xf32>
    %203 = vector.extract_strided_slice %202 {offsets = [0, 0], sizes = [2, 128], strides = [1, 1]} : vector<2x160xf32> to vector<2x128xf32>
    %204 = vector.extract_strided_slice %202 {offsets = [0, 128], sizes = [2, 32], strides = [1, 1]} : vector<2x160xf32> to vector<2x32xf32>
    %205 = arith.truncf %178 : vector<2x8xf32> to vector<2x8xbf16>
    %cst_35 = arith.constant dense<0.000000e+00> : vector<2x32xf32>
    %206 = tpu.matmul %205, %2, %cst_35 {dimension_numbers = #tpu.dot_dimension_numbers<[1], [0], [0], [1], [0, 0, 1, 1], [], []>} : vector<2x8xbf16>, vector<8x32xbf16>, vector<2x32xf32> -> vector<2x32xf32>
    %207 = arith.addf %204, %206 : vector<2x32xf32>
    %208 = arith.addf %207, %7 : vector<2x32xf32>
    %209 = arith.addf %208, %208 : vector<2x32xf32>
    %210 = arith.select %24, %209, %208 : vector<2x32xi1>, vector<2x32xf32>
    %211 = arith.negf %210 : vector<2x32xf32>
    %212 = math.exp %211 : vector<2x32xf32>
    %cst_36 = arith.constant 1.000000e+00 : f32
    %213 = vector.broadcast %cst_36 : f32 to vector<2x32xf32>
    %214 = arith.addf %213, %212 : vector<2x32xf32>
    %215 = arith.divf %213, %214 : vector<2x32xf32>
    %216 = arith.addf %215, %215 : vector<2x32xf32>
    %cst_37 = arith.constant 1.000000e+00 : f32
    %217 = vector.broadcast %cst_37 : f32 to vector<2x32xf32>
    %218 = arith.subf %216, %217 : vector<2x32xf32>
    %219 = arith.select %24, %218, %215 : vector<2x32xi1>, vector<2x32xf32>
    %220 = vector.extract_strided_slice %219 {offsets = [0, 0], sizes = [2, 8], strides = [1, 1]} : vector<2x32xf32> to vector<2x8xf32>
    %221 = vector.extract_strided_slice %219 {offsets = [0, 8], sizes = [2, 8], strides = [1, 1]} : vector<2x32xf32> to vector<2x8xf32>
    %222 = vector.extract_strided_slice %219 {offsets = [0, 16], sizes = [2, 8], strides = [1, 1]} : vector<2x32xf32> to vector<2x8xf32>
    %223 = vector.extract_strided_slice %219 {offsets = [0, 24], sizes = [2, 8], strides = [1, 1]} : vector<2x32xf32> to vector<2x8xf32>
    %224 = arith.mulf %221, %176 : vector<2x8xf32>
    %225 = arith.mulf %220, %222 : vector<2x8xf32>
    %226 = arith.addf %224, %225 : vector<2x8xf32>
    %227 = math.tanh %226 : vector<2x8xf32>
    %228 = arith.mulf %223, %227 : vector<2x8xf32>
    %229 = vector.extract_strided_slice %12 {offsets = [8, 0], sizes = [2, 128], strides = [1, 1]} : vector<16x128xf32> to vector<2x128xf32>
    %230 = arith.addf %229, %203 : vector<2x128xf32>
    %231 = arith.addf %230, %230 : vector<2x128xf32>
    %232 = arith.select %18, %231, %230 : vector<2x128xi1>, vector<2x128xf32>
    %233 = arith.negf %232 : vector<2x128xf32>
    %234 = math.exp %233 : vector<2x128xf32>
    %cst_38 = arith.constant 1.000000e+00 : f32
    %235 = vector.broadcast %cst_38 : f32 to vector<2x128xf32>
    %236 = arith.addf %235, %234 : vector<2x128xf32>
    %237 = arith.divf %235, %236 : vector<2x128xf32>
    %238 = arith.addf %237, %237 : vector<2x128xf32>
    %cst_39 = arith.constant 1.000000e+00 : f32
    %239 = vector.broadcast %cst_39 : f32 to vector<2x128xf32>
    %240 = arith.subf %238, %239 : vector<2x128xf32>
    %241 = arith.select %18, %240, %237 : vector<2x128xi1>, vector<2x128xf32>
    %242 = vector.extract_strided_slice %241 {offsets = [0, 0], sizes = [2, 32], strides = [1, 1]} : vector<2x128xf32> to vector<2x32xf32>
    %243 = vector.extract_strided_slice %241 {offsets = [0, 32], sizes = [2, 32], strides = [1, 1]} : vector<2x128xf32> to vector<2x32xf32>
    %244 = vector.extract_strided_slice %241 {offsets = [0, 64], sizes = [2, 32], strides = [1, 1]} : vector<2x128xf32> to vector<2x32xf32>
    %245 = vector.extract_strided_slice %241 {offsets = [0, 96], sizes = [2, 32], strides = [1, 1]} : vector<2x128xf32> to vector<2x32xf32>
    %246 = arith.mulf %243, %198 : vector<2x32xf32>
    %247 = arith.mulf %242, %244 : vector<2x32xf32>
    %248 = arith.addf %246, %247 : vector<2x32xf32>
    %249 = math.tanh %248 : vector<2x32xf32>
    %250 = arith.mulf %245, %249 : vector<2x32xf32>
    %251 = arith.truncf %250 : vector<2x32xf32> to vector<2x32xbf16>
    %cst_40 = arith.constant dense<0.000000e+00> : vector<2x160xf32>
    %252 = tpu.matmul %251, %1, %cst_40 {dimension_numbers = #tpu.dot_dimension_numbers<[1], [0], [0], [1], [0, 0, 1, 1], [], []>} : vector<2x32xbf16>, vector<32x160xbf16>, vector<2x160xf32> -> vector<2x160xf32>
    %253 = vector.extract_strided_slice %252 {offsets = [0, 0], sizes = [2, 128], strides = [1, 1]} : vector<2x160xf32> to vector<2x128xf32>
    %254 = vector.extract_strided_slice %252 {offsets = [0, 128], sizes = [2, 32], strides = [1, 1]} : vector<2x160xf32> to vector<2x32xf32>
    %255 = arith.truncf %228 : vector<2x8xf32> to vector<2x8xbf16>
    %cst_41 = arith.constant dense<0.000000e+00> : vector<2x32xf32>
    %256 = tpu.matmul %255, %2, %cst_41 {dimension_numbers = #tpu.dot_dimension_numbers<[1], [0], [0], [1], [0, 0, 1, 1], [], []>} : vector<2x8xbf16>, vector<8x32xbf16>, vector<2x32xf32> -> vector<2x32xf32>
    %257 = arith.addf %254, %256 : vector<2x32xf32>
    %258 = arith.addf %257, %7 : vector<2x32xf32>
    %259 = arith.addf %258, %258 : vector<2x32xf32>
    %260 = arith.select %24, %259, %258 : vector<2x32xi1>, vector<2x32xf32>
    %261 = arith.negf %260 : vector<2x32xf32>
    %262 = math.exp %261 : vector<2x32xf32>
    %cst_42 = arith.constant 1.000000e+00 : f32
    %263 = vector.broadcast %cst_42 : f32 to vector<2x32xf32>
    %264 = arith.addf %263, %262 : vector<2x32xf32>
    %265 = arith.divf %263, %264 : vector<2x32xf32>
    %266 = arith.addf %265, %265 : vector<2x32xf32>
    %cst_43 = arith.constant 1.000000e+00 : f32
    %267 = vector.broadcast %cst_43 : f32 to vector<2x32xf32>
    %268 = arith.subf %266, %267 : vector<2x32xf32>
    %269 = arith.select %24, %268, %265 : vector<2x32xi1>, vector<2x32xf32>
    %270 = vector.extract_strided_slice %269 {offsets = [0, 0], sizes = [2, 8], strides = [1, 1]} : vector<2x32xf32> to vector<2x8xf32>
    %271 = vector.extract_strided_slice %269 {offsets = [0, 8], sizes = [2, 8], strides = [1, 1]} : vector<2x32xf32> to vector<2x8xf32>
    %272 = vector.extract_strided_slice %269 {offsets = [0, 16], sizes = [2, 8], strides = [1, 1]} : vector<2x32xf32> to vector<2x8xf32>
    %273 = vector.extract_strided_slice %269 {offsets = [0, 24], sizes = [2, 8], strides = [1, 1]} : vector<2x32xf32> to vector<2x8xf32>
    %274 = arith.mulf %271, %226 : vector<2x8xf32>
    %275 = arith.mulf %270, %272 : vector<2x8xf32>
    %276 = arith.addf %274, %275 : vector<2x8xf32>
    %277 = math.tanh %276 : vector<2x8xf32>
    %278 = arith.mulf %273, %277 : vector<2x8xf32>
    %279 = vector.extract_strided_slice %12 {offsets = [10, 0], sizes = [2, 128], strides = [1, 1]} : vector<16x128xf32> to vector<2x128xf32>
    %280 = arith.addf %279, %253 : vector<2x128xf32>
    %281 = arith.addf %280, %280 : vector<2x128xf32>
    %282 = arith.select %18, %281, %280 : vector<2x128xi1>, vector<2x128xf32>
    %283 = arith.negf %282 : vector<2x128xf32>
    %284 = math.exp %283 : vector<2x128xf32>
    %cst_44 = arith.constant 1.000000e+00 : f32
    %285 = vector.broadcast %cst_44 : f32 to vector<2x128xf32>
    %286 = arith.addf %285, %284 : vector<2x128xf32>
    %287 = arith.divf %285, %286 : vector<2x128xf32>
    %288 = arith.addf %287, %287 : vector<2x128xf32>
    %cst_45 = arith.constant 1.000000e+00 : f32
    %289 = vector.broadcast %cst_45 : f32 to vector<2x128xf32>
    %290 = arith.subf %288, %289 : vector<2x128xf32>
    %291 = arith.select %18, %290, %287 : vector<2x128xi1>, vector<2x128xf32>
    %292 = vector.extract_strided_slice %291 {offsets = [0, 0], sizes = [2, 32], strides = [1, 1]} : vector<2x128xf32> to vector<2x32xf32>
    %293 = vector.extract_strided_slice %291 {offsets = [0, 32], sizes = [2, 32], strides = [1, 1]} : vector<2x128xf32> to vector<2x32xf32>
    %294 = vector.extract_strided_slice %291 {offsets = [0, 64], sizes = [2, 32], strides = [1, 1]} : vector<2x128xf32> to vector<2x32xf32>
    %295 = vector.extract_strided_slice %291 {offsets = [0, 96], sizes = [2, 32], strides = [1, 1]} : vector<2x128xf32> to vector<2x32xf32>
    %296 = arith.mulf %293, %248 : vector<2x32xf32>
    %297 = arith.mulf %292, %294 : vector<2x32xf32>
    %298 = arith.addf %296, %297 : vector<2x32xf32>
    %299 = math.tanh %298 : vector<2x32xf32>
    %300 = arith.mulf %295, %299 : vector<2x32xf32>
    %301 = arith.truncf %300 : vector<2x32xf32> to vector<2x32xbf16>
    %cst_46 = arith.constant dense<0.000000e+00> : vector<2x160xf32>
    %302 = tpu.matmul %301, %1, %cst_46 {dimension_numbers = #tpu.dot_dimension_numbers<[1], [0], [0], [1], [0, 0, 1, 1], [], []>} : vector<2x32xbf16>, vector<32x160xbf16>, vector<2x160xf32> -> vector<2x160xf32>
    %303 = vector.extract_strided_slice %302 {offsets = [0, 0], sizes = [2, 128], strides = [1, 1]} : vector<2x160xf32> to vector<2x128xf32>
    %304 = vector.extract_strided_slice %302 {offsets = [0, 128], sizes = [2, 32], strides = [1, 1]} : vector<2x160xf32> to vector<2x32xf32>
    %305 = arith.truncf %278 : vector<2x8xf32> to vector<2x8xbf16>
    %cst_47 = arith.constant dense<0.000000e+00> : vector<2x32xf32>
    %306 = tpu.matmul %305, %2, %cst_47 {dimension_numbers = #tpu.dot_dimension_numbers<[1], [0], [0], [1], [0, 0, 1, 1], [], []>} : vector<2x8xbf16>, vector<8x32xbf16>, vector<2x32xf32> -> vector<2x32xf32>
    %307 = arith.addf %304, %306 : vector<2x32xf32>
    %308 = arith.addf %307, %7 : vector<2x32xf32>
    %309 = arith.addf %308, %308 : vector<2x32xf32>
    %310 = arith.select %24, %309, %308 : vector<2x32xi1>, vector<2x32xf32>
    %311 = arith.negf %310 : vector<2x32xf32>
    %312 = math.exp %311 : vector<2x32xf32>
    %cst_48 = arith.constant 1.000000e+00 : f32
    %313 = vector.broadcast %cst_48 : f32 to vector<2x32xf32>
    %314 = arith.addf %313, %312 : vector<2x32xf32>
    %315 = arith.divf %313, %314 : vector<2x32xf32>
    %316 = arith.addf %315, %315 : vector<2x32xf32>
    %cst_49 = arith.constant 1.000000e+00 : f32
    %317 = vector.broadcast %cst_49 : f32 to vector<2x32xf32>
    %318 = arith.subf %316, %317 : vector<2x32xf32>
    %319 = arith.select %24, %318, %315 : vector<2x32xi1>, vector<2x32xf32>
    %320 = vector.extract_strided_slice %319 {offsets = [0, 0], sizes = [2, 8], strides = [1, 1]} : vector<2x32xf32> to vector<2x8xf32>
    %321 = vector.extract_strided_slice %319 {offsets = [0, 8], sizes = [2, 8], strides = [1, 1]} : vector<2x32xf32> to vector<2x8xf32>
    %322 = vector.extract_strided_slice %319 {offsets = [0, 16], sizes = [2, 8], strides = [1, 1]} : vector<2x32xf32> to vector<2x8xf32>
    %323 = vector.extract_strided_slice %319 {offsets = [0, 24], sizes = [2, 8], strides = [1, 1]} : vector<2x32xf32> to vector<2x8xf32>
    %324 = arith.mulf %321, %276 : vector<2x8xf32>
    %325 = arith.mulf %320, %322 : vector<2x8xf32>
    %326 = arith.addf %324, %325 : vector<2x8xf32>
    %327 = math.tanh %326 : vector<2x8xf32>
    %328 = arith.mulf %323, %327 : vector<2x8xf32>
    %329 = vector.extract_strided_slice %12 {offsets = [12, 0], sizes = [2, 128], strides = [1, 1]} : vector<16x128xf32> to vector<2x128xf32>
    %330 = arith.addf %329, %303 : vector<2x128xf32>
    %331 = arith.addf %330, %330 : vector<2x128xf32>
    %332 = arith.select %18, %331, %330 : vector<2x128xi1>, vector<2x128xf32>
    %333 = arith.negf %332 : vector<2x128xf32>
    %334 = math.exp %333 : vector<2x128xf32>
    %cst_50 = arith.constant 1.000000e+00 : f32
    %335 = vector.broadcast %cst_50 : f32 to vector<2x128xf32>
    %336 = arith.addf %335, %334 : vector<2x128xf32>
    %337 = arith.divf %335, %336 : vector<2x128xf32>
    %338 = arith.addf %337, %337 : vector<2x128xf32>
    %cst_51 = arith.constant 1.000000e+00 : f32
    %339 = vector.broadcast %cst_51 : f32 to vector<2x128xf32>
    %340 = arith.subf %338, %339 : vector<2x128xf32>
    %341 = arith.select %18, %340, %337 : vector<2x128xi1>, vector<2x128xf32>
    %342 = vector.extract_strided_slice %341 {offsets = [0, 0], sizes = [2, 32], strides = [1, 1]} : vector<2x128xf32> to vector<2x32xf32>
    %343 = vector.extract_strided_slice %341 {offsets = [0, 32], sizes = [2, 32], strides = [1, 1]} : vector<2x128xf32> to vector<2x32xf32>
    %344 = vector.extract_strided_slice %341 {offsets = [0, 64], sizes = [2, 32], strides = [1, 1]} : vector<2x128xf32> to vector<2x32xf32>
    %345 = vector.extract_strided_slice %341 {offsets = [0, 96], sizes = [2, 32], strides = [1, 1]} : vector<2x128xf32> to vector<2x32xf32>
    %346 = arith.mulf %343, %298 : vector<2x32xf32>
    %347 = arith.mulf %342, %344 : vector<2x32xf32>
    %348 = arith.addf %346, %347 : vector<2x32xf32>
    %349 = math.tanh %348 : vector<2x32xf32>
    %350 = arith.mulf %345, %349 : vector<2x32xf32>
    %351 = arith.truncf %350 : vector<2x32xf32> to vector<2x32xbf16>
    %cst_52 = arith.constant dense<0.000000e+00> : vector<2x160xf32>
    %352 = tpu.matmul %351, %1, %cst_52 {dimension_numbers = #tpu.dot_dimension_numbers<[1], [0], [0], [1], [0, 0, 1, 1], [], []>} : vector<2x32xbf16>, vector<32x160xbf16>, vector<2x160xf32> -> vector<2x160xf32>
    %353 = vector.extract_strided_slice %352 {offsets = [0, 0], sizes = [2, 128], strides = [1, 1]} : vector<2x160xf32> to vector<2x128xf32>
    %354 = vector.extract_strided_slice %352 {offsets = [0, 128], sizes = [2, 32], strides = [1, 1]} : vector<2x160xf32> to vector<2x32xf32>
    %355 = arith.truncf %328 : vector<2x8xf32> to vector<2x8xbf16>
    %cst_53 = arith.constant dense<0.000000e+00> : vector<2x32xf32>
    %356 = tpu.matmul %355, %2, %cst_53 {dimension_numbers = #tpu.dot_dimension_numbers<[1], [0], [0], [1], [0, 0, 1, 1], [], []>} : vector<2x8xbf16>, vector<8x32xbf16>, vector<2x32xf32> -> vector<2x32xf32>
    %357 = arith.addf %354, %356 : vector<2x32xf32>
    %358 = arith.addf %357, %7 : vector<2x32xf32>
    %359 = arith.addf %358, %358 : vector<2x32xf32>
    %360 = arith.select %24, %359, %358 : vector<2x32xi1>, vector<2x32xf32>
    %361 = arith.negf %360 : vector<2x32xf32>
    %362 = math.exp %361 : vector<2x32xf32>
    %cst_54 = arith.constant 1.000000e+00 : f32
    %363 = vector.broadcast %cst_54 : f32 to vector<2x32xf32>
    %364 = arith.addf %363, %362 : vector<2x32xf32>
    %365 = arith.divf %363, %364 : vector<2x32xf32>
    %366 = arith.addf %365, %365 : vector<2x32xf32>
    %cst_55 = arith.constant 1.000000e+00 : f32
    %367 = vector.broadcast %cst_55 : f32 to vector<2x32xf32>
    %368 = arith.subf %366, %367 : vector<2x32xf32>
    %369 = arith.select %24, %368, %365 : vector<2x32xi1>, vector<2x32xf32>
    %370 = vector.extract_strided_slice %369 {offsets = [0, 0], sizes = [2, 8], strides = [1, 1]} : vector<2x32xf32> to vector<2x8xf32>
    %371 = vector.extract_strided_slice %369 {offsets = [0, 8], sizes = [2, 8], strides = [1, 1]} : vector<2x32xf32> to vector<2x8xf32>
    %372 = vector.extract_strided_slice %369 {offsets = [0, 16], sizes = [2, 8], strides = [1, 1]} : vector<2x32xf32> to vector<2x8xf32>
    %373 = vector.extract_strided_slice %369 {offsets = [0, 24], sizes = [2, 8], strides = [1, 1]} : vector<2x32xf32> to vector<2x8xf32>
    %374 = arith.mulf %371, %326 : vector<2x8xf32>
    %375 = arith.mulf %370, %372 : vector<2x8xf32>
    %376 = arith.addf %374, %375 : vector<2x8xf32>
    %377 = math.tanh %376 : vector<2x8xf32>
    %378 = arith.mulf %373, %377 : vector<2x8xf32>
    %379 = vector.extract_strided_slice %12 {offsets = [14, 0], sizes = [2, 128], strides = [1, 1]} : vector<16x128xf32> to vector<2x128xf32>
    %380 = arith.addf %379, %353 : vector<2x128xf32>
    %381 = arith.addf %380, %380 : vector<2x128xf32>
    %382 = arith.select %18, %381, %380 : vector<2x128xi1>, vector<2x128xf32>
    %383 = arith.negf %382 : vector<2x128xf32>
    %384 = math.exp %383 : vector<2x128xf32>
    %cst_56 = arith.constant 1.000000e+00 : f32
    %385 = vector.broadcast %cst_56 : f32 to vector<2x128xf32>
    %386 = arith.addf %385, %384 : vector<2x128xf32>
    %387 = arith.divf %385, %386 : vector<2x128xf32>
    %388 = arith.addf %387, %387 : vector<2x128xf32>
    %cst_57 = arith.constant 1.000000e+00 : f32
    %389 = vector.broadcast %cst_57 : f32 to vector<2x128xf32>
    %390 = arith.subf %388, %389 : vector<2x128xf32>
    %391 = arith.select %18, %390, %387 : vector<2x128xi1>, vector<2x128xf32>
    %392 = vector.extract_strided_slice %391 {offsets = [0, 0], sizes = [2, 32], strides = [1, 1]} : vector<2x128xf32> to vector<2x32xf32>
    %393 = vector.extract_strided_slice %391 {offsets = [0, 32], sizes = [2, 32], strides = [1, 1]} : vector<2x128xf32> to vector<2x32xf32>
    %394 = vector.extract_strided_slice %391 {offsets = [0, 64], sizes = [2, 32], strides = [1, 1]} : vector<2x128xf32> to vector<2x32xf32>
    %395 = vector.extract_strided_slice %391 {offsets = [0, 96], sizes = [2, 32], strides = [1, 1]} : vector<2x128xf32> to vector<2x32xf32>
    %396 = arith.mulf %393, %348 : vector<2x32xf32>
    %397 = arith.mulf %392, %394 : vector<2x32xf32>
    %398 = arith.addf %396, %397 : vector<2x32xf32>
    %399 = math.tanh %398 : vector<2x32xf32>
    %400 = arith.mulf %395, %399 : vector<2x32xf32>
    %401 = arith.truncf %400 : vector<2x32xf32> to vector<2x32xbf16>
    %cst_58 = arith.constant dense<0.000000e+00> : vector<2x160xf32>
    %402 = tpu.matmul %401, %1, %cst_58 {dimension_numbers = #tpu.dot_dimension_numbers<[1], [0], [0], [1], [0, 0, 1, 1], [], []>} : vector<2x32xbf16>, vector<32x160xbf16>, vector<2x160xf32> -> vector<2x160xf32>
    %403 = vector.extract_strided_slice %402 {offsets = [0, 128], sizes = [2, 32], strides = [1, 1]} : vector<2x160xf32> to vector<2x32xf32>
    %404 = arith.truncf %378 : vector<2x8xf32> to vector<2x8xbf16>
    %cst_59 = arith.constant dense<0.000000e+00> : vector<2x32xf32>
    %405 = tpu.matmul %404, %2, %cst_59 {dimension_numbers = #tpu.dot_dimension_numbers<[1], [0], [0], [1], [0, 0, 1, 1], [], []>} : vector<2x8xbf16>, vector<8x32xbf16>, vector<2x32xf32> -> vector<2x32xf32>
    %406 = arith.addf %403, %405 : vector<2x32xf32>
    %407 = arith.addf %406, %7 : vector<2x32xf32>
    %408 = arith.addf %407, %407 : vector<2x32xf32>
    %409 = arith.select %24, %408, %407 : vector<2x32xi1>, vector<2x32xf32>
    %410 = arith.negf %409 : vector<2x32xf32>
    %411 = math.exp %410 : vector<2x32xf32>
    %cst_60 = arith.constant 1.000000e+00 : f32
    %412 = vector.broadcast %cst_60 : f32 to vector<2x32xf32>
    %413 = arith.addf %412, %411 : vector<2x32xf32>
    %414 = arith.divf %412, %413 : vector<2x32xf32>
    %415 = arith.addf %414, %414 : vector<2x32xf32>
    %cst_61 = arith.constant 1.000000e+00 : f32
    %416 = vector.broadcast %cst_61 : f32 to vector<2x32xf32>
    %417 = arith.subf %415, %416 : vector<2x32xf32>
    %418 = arith.select %24, %417, %414 : vector<2x32xi1>, vector<2x32xf32>
    %419 = vector.extract_strided_slice %418 {offsets = [0, 0], sizes = [2, 8], strides = [1, 1]} : vector<2x32xf32> to vector<2x8xf32>
    %420 = vector.extract_strided_slice %418 {offsets = [0, 8], sizes = [2, 8], strides = [1, 1]} : vector<2x32xf32> to vector<2x8xf32>
    %421 = vector.extract_strided_slice %418 {offsets = [0, 16], sizes = [2, 8], strides = [1, 1]} : vector<2x32xf32> to vector<2x8xf32>
    %422 = vector.extract_strided_slice %418 {offsets = [0, 24], sizes = [2, 8], strides = [1, 1]} : vector<2x32xf32> to vector<2x8xf32>
    %423 = arith.mulf %420, %376 : vector<2x8xf32>
    %424 = arith.mulf %419, %421 : vector<2x8xf32>
    %425 = arith.addf %423, %424 : vector<2x8xf32>
    %426 = math.tanh %425 : vector<2x8xf32>
    %427 = arith.mulf %422, %426 : vector<2x8xf32>
    %428 = arith.truncf %427 : vector<2x8xf32> to vector<2x8xbf16>
    %cst_62 = arith.constant dense<0.000000e+00> : vector<2x8xf32>
    %429 = tpu.matmul %428, %3, %cst_62 {dimension_numbers = #tpu.dot_dimension_numbers<[1], [0], [0], [1], [0, 0, 1, 1], [], []>} : vector<2x8xbf16>, vector<8x8xbf16>, vector<2x8xf32> -> vector<2x8xf32>
    %430 = vector.broadcast %8 : vector<1x8xf32> to vector<2x8xf32>
    %431 = arith.addf %429, %430 : vector<2x8xf32>
    %c0_63 = arith.constant 0 : index
    %c0_64 = arith.constant 0 : index
    %432 = vector.load %arg3[%c0_63, %c0_64] : memref<2x8xf32, #tpu.memory_space<vmem>>, vector<2x8xf32>
    tpu.vector_store %arg3[%c0_63, %c0_64], %431 {strides = array<i32>} : memref<2x8xf32, #tpu.memory_space<vmem>>, vector<2x8xf32>,
    return
  }
}

</mosaic_0001>

<llo_original>
// kernel: tpu_custom_call.1
$region0: #{tpu_custom_call.1}
  #allocation0 [shape = 'u32[]', space=smem, size = 0x4, offset = 0x4, fixed_abs, tag = 'smem constant byte address 0x4 - core index']
  #allocation1 [shape = 'u32[72,128]{1,0:T(1,128)}', space=vmem, size = 0x9000, scoped, tag = 'internal scratch']
  %s0 = inlined_call_operand.hbm [shape: bf16[16,16], index: 0, kind: input, shape index: {}]
  %s1 = inlined_call_operand.hbm [shape: bf16[80,160], index: 1, kind: input, shape index: {}]
  %s2 = inlined_call_operand.hbm [shape: f32[3,128], index: 2, kind: input, shape index: {}]
  %s3 = inlined_call_operand.hbm [shape: f32[2,8], index: 3, kind: output, shape index: {}]
  %s4 = sld [smem:[#allocation0]]
  $region34: #{tpu_custom_call.1} parent=0
    _
  %s6 = ssub.s32 1, %s4
  %s7 = scalar_select 0, %s6, %s4
  $region1: #{tpu_custom_call.1} parent=0
    #allocation2 [shape = 'u8[4096]{0}', space=vmem, size = 0x1000, scoped, tag = 'input window, operand 0, single buffered']
    #allocation3 [shape = 's32[1]{0}', space=sflag, size = 0x4, scoped, tag = 'scoped memory for tpu_custom_call.1']
    #allocation4 [shape = 's32[1]{0}', space=sflag, size = 0x4, scoped, tag = 'scoped memory for tpu_custom_call.1']
    #allocation5 [shape = 'u8[40960]{0}', space=vmem, size = 0xa000, scoped, tag = 'input window, operand 1, single buffered']
    #allocation6 [shape = 's32[1]{0}', space=sflag, size = 0x4, scoped, tag = 'scoped memory for tpu_custom_call.1']
    #allocation7 [shape = 'u8[2048]{0}', space=vmem, size = 0x800, scoped, tag = 'input window, operand 2, single buffered']
    #allocation8 [shape = 'u8[1024]{0}', space=vmem, size = 0x400, scoped, tag = 'output window, operand 0, single buffered']
    %8 = vsyncpa [#allocation3], 0
    %9 = vsyncpa [#allocation6], 0
    %10 = vsyncpa [#allocation4], 0
    // Predicated region
    $region2: #{tpu_custom_call.1} parent=1 // pred_check
      _
    $region3: #{tpu_custom_call.1} parent=1 // pred_check_branch
      %12 = sbr.rel (0) target = $region5
    $region4: #{tpu_custom_call.1} parent=1 // pred_region
      %14 = vsyncadd [#allocation3], 0
      %s15 = sshll.u32 %s0, 4
      %s16 = int_to_ptr.hbm [resolvable:$true] %s15
      %s17 = sshll.u32 [#allocation2], 4
      %s18 = int_to_ptr.vmem [resolvable:$true] %s17
      %23 = dma.hbm_to_vmem [thread:$0]  %s16, 128, %s18, [#allocation3], 64, 64, 4
    $region5: #{tpu_custom_call.1} parent=1 // pred_fallthru
      _
    // Predicated region
    $region6: #{tpu_custom_call.1} parent=1 // pred_check
      _
    $region7: #{tpu_custom_call.1} parent=1 // pred_check_branch
      %25 = sbr.rel (0) target = $region9
    $region8: #{tpu_custom_call.1} parent=1 // pred_region
      %27 = vsyncadd [#allocation6], 0
      %s28 = sshll.u32 %s1, 4
      %s29 = int_to_ptr.hbm [resolvable:$true] %s28
      %s30 = sshll.u32 [#allocation5], 4
      %s31 = int_to_ptr.vmem [resolvable:$true] %s30
      %36 = dma.hbm_to_vmem [thread:$0]  %s29, 1280, %s31, [#allocation6], 128, 128, 8
    $region9: #{tpu_custom_call.1} parent=1 // pred_fallthru
      _
    // Predicated region
    $region10: #{tpu_custom_call.1} parent=1 // pred_check
      _
    $region11: #{tpu_custom_call.1} parent=1 // pred_check_branch
      %38 = sbr.rel (0) target = $region13
    $region12: #{tpu_custom_call.1} parent=1 // pred_region
      %40 = vsyncadd [#allocation6], 0
      %s42 = sshll.u32 %s2, 4
      %s43 = int_to_ptr.hbm [resolvable:$true] %s42
      %s44 = sshll.u32 [#allocation7], 4
      %s45 = int_to_ptr.vmem [resolvable:$true] %s44
      %47 = dma.hbm_to_vmem [thread:$0]  %s43, 64, %s45, [#allocation6]
    $region13: #{tpu_custom_call.1} parent=1 // pred_fallthru
      _
    // Predicated region
    $region14: #{tpu_custom_call.1} parent=1 // pred_check
      _
    $region15: #{tpu_custom_call.1} parent=1 // pred_check_branch
      %49 = sbr.rel (0) target = $region17
    $region16: #{tpu_custom_call.1} parent=1 // pred_region
      %51 = dma.done [#allocation3], 128
    $region17: #{tpu_custom_call.1} parent=1 // pred_fallthru
      _
    // Predicated region
    $region18: #{tpu_custom_call.1} parent=1 // pred_check
      _
    $region19: #{tpu_custom_call.1} parent=1 // pred_check_branch
      %53 = sbr.rel (0) target = $region21
    $region20: #{tpu_custom_call.1} parent=1 // pred_region
      %55 = dma.done [#allocation6], 1280
    $region21: #{tpu_custom_call.1} parent=1 // pred_fallthru
      _
    // Predicated region
    $region22: #{tpu_custom_call.1} parent=1 // pred_check
      _
    $region23: #{tpu_custom_call.1} parent=1 // pred_check_branch
      %57 = sbr.rel (0) target = $region25
    $region24: #{tpu_custom_call.1} parent=1 // pred_region
      %59 = dma.done [#allocation6], 64
    $region25: #{tpu_custom_call.1} parent=1 // pred_fallthru
      _
    %v61 = vld [vmem:[#allocation5] sm:$0xf]
    %v62 = vld [vmem:[#allocation5 + $0x8] sm:$0xf]
    %v63 = vld [vmem:[#allocation5 + $0x10] sm:$0xff]
    %v64 = vld [vmem:[#allocation5 + $0x18] sm:$0xff]
    %v65 = vld [vmem:[#allocation5 + $0x20] sm:$0xff]
    %v66 = vld [vmem:[#allocation5 + $0x28] sm:$0xff]
    %v67 = vld [vmem:[#allocation5 + $0x30] sm:$0xf]
    %v68 = vld [vmem:[#allocation5 + $0x40] sm:$0xf]
    %v69 = vld [vmem:[#allocation7] sm:$0x1]
    %v70 = vld [vmem:[#allocation7 + $0x1] sm:$0x1]
    %v71 = vperm.slane %v70, 0
    %v72 = vld [vmem:[#allocation7 + $0x2] sm:$0x1]
    %v73 = vld [vmem:[#allocation2] sm:$0xf]
    %v74 = vld [vmem:[#allocation2 + $0x4] sm:$0xf]
    %v75 = vperm.slane %v69, 0
    %v78 = vunpack.c.l.b16 %v73
    %v79 = vunpack.c.l.b16 %v74
    %v80 = vpack.c.b16 %v79, %v78
    %v83 = vunpack.c.l.b16 %v61
    %v84 = vunpack.c.l.b16 %v62
    %v85 = vpack.c.b16 %v84, %v83
    %vm87 = vcmask 130048
    %v89 = vsel %vm87, %v80, 0
    %91 = vmatpush.bf16.msra.mxu0 0
    %92 = vmatpush.bf16.msra.mxu0 0
    %93 = vmatpush.bf16.msra.mxu0 0
    %94 = vmatpush.bf16.msra.mxu0 0
    %95 = vmatpush.bf16.msra.mxu0 0
    %96 = vmatpush.bf16.msra.mxu0 0
    %97 = vmatpush.bf16.msra.mxu0 0
    %98 = vmatpush.bf16.msra.mxu0 %v85
    %99 = vmatmul.bf16.gmra.mxu0 %v89
    %v100 = vpop.f32.mrf.mxu0
    %v101 = vadd.f32 %v75, %v100
    %v102 = vpop.f32.mrf.mxu0
    %v103 = vadd.f32 %v75, %v102
    %104 = vdwg.mxu0
    %v105 = vlaneseq
    %v106 = vand.u32 %v105, 127
    %vm107 = vcmp.ge.s32.totalorder %v106, 64
    %vm108 = vcmp.lt.s32.totalorder %v106, 96
    %vm109 = vmand %vm107, %vm108
    %vm110 = vcmp.ge.s32.totalorder %v106, 16
    %vm111 = vcmp.lt.s32.totalorder %v106, 24
    %vm112 = vmand %vm110, %vm111
    %v113 = vadd.f32 %v101, 0.0
    %v114 = vadd.f32 %v113, %v113
    %v115 = vsel %vm109, %v114, %v113
    %v116 = vxor.u32 %v115, 2147483648
    %v117 = vmul.f32 %v116, 1.442695
    %v118 = vpow.pop %v117
    %v119 = vadd.f32 %v118, 1.0
    %v120 = vrcp.pop %v119
    %v121 = vmul.f32 %v119, %v120
    %v122 = vsub.f32 1.0, %v121
    %v123 = vmul.f32 %v120, %v122
    %v124 = vadd.f32 %v120, %v123
    %vm125 = vweird.f32 %v119
    %vm126 = vweird.f32 %v120
    %vm127 = vmor %vm125, %vm126
    %v128 = vsel %vm127, %v120, %v124
    %v129 = vand.u32 2147483647, %v119
    %vm130 = vcmp.eq.f32.partialorder %v129, 8.507059e+37
    %v131 = vand.u32 %v119, 2147483648
    %v132 = vor.u32 1.1754944e-38, %v131
    %v133 = vsel %vm130, %v132, %v128
    %v134 = vmul.f32 1.0, %v133
    %v135 = vadd.f32 %v134, %v134
    %v136 = vsub.f32 %v135, 1.0
    %v137 = vsel %vm109, %v136, %v134
    %v138 = vmul.f32 %v137, 0.0
    %140 = vrot.lane.b32.xlu0 %v137, 64
    %v141 = vpop.permute.xlu0 %140
    %v143 = vmul.f32 %v137, %v141
    %145 = vrot.lane.b32.xlu0 %v143, 32
    %v146 = vpop.permute.xlu0 %145
    %v148 = vadd.f32 %v138, %v146
    %v149 = vtanh.pop %v148
    %151 = vrot.lane.b32.xlu0 %v149, 64
    %v152 = vpop.permute.xlu0 %151
    %v154 = vmul.f32 %v137, %v152
    %v155 = vpack.c.bf16 %v154, %v154
    %157 = vrot.lane.b32.xlu0 %v155, 32
    %v158 = vpop.permute.xlu0 %157
    %v163 = vunpack.c.l.b16 %v63
    %v164 = vunpack.c.h.b16 %v63
    %v165 = vunpack.c.l.b16 %v64
    %v166 = vunpack.c.h.b16 %v64
    %v167 = vunpack.c.l.b16 %v65
    %v168 = vunpack.c.h.b16 %v65
    %v169 = vunpack.c.l.b16 %v66
    %v170 = vunpack.c.h.b16 %v66
    %v171 = vpack.c.b16 %v165, %v163
    %v172 = vpack.c.b16 %v166, %v164
    %v173 = vpack.c.b16 %v169, %v167
    %v174 = vpack.c.b16 %v170, %v168
    %vm179 = vcmask 261120
    %v181 = vsel %vm179, %v158, 0
    %183 = vmatpush.bf16.msra.mxu0 0
    %184 = vmatpush.bf16.msra.mxu0 0
    %185 = vmatpush.bf16.msra.mxu0 0
    %186 = vmatpush.bf16.msra.mxu0 0
    %187 = vmatpush.bf16.msra.mxu0 0
    %188 = vmatpush.bf16.msra.mxu0 0
    %189 = vmatpush.bf16.msra.mxu0 %v173
    %190 = vmatpush.bf16.msra.mxu0 %v171
    %191 = vmatmul.bf16.gmra.mxu0 %v181
    %v192 = vpop.f32.mrf.mxu0
    %v193 = vadd.f32 0.0, %v192
    %v194 = vpop.f32.mrf.mxu0
    %195 = vdwg.mxu0
    %196 = vmatpush.bf16.msra.mxu0 0
    %197 = vmatpush.bf16.msra.mxu0 0
    %198 = vmatpush.bf16.msra.mxu0 0
    %199 = vmatpush.bf16.msra.mxu0 0
    %200 = vmatpush.bf16.msra.mxu0 0
    %201 = vmatpush.bf16.msra.mxu0 0
    %202 = vmatpush.bf16.msra.mxu0 %v174
    %203 = vmatpush.bf16.msra.mxu0 %v172
    %204 = vmatmul.bf16.gmra.mxu0 %v181
    %v205 = vpop.f32.mrf.mxu0
    %v206 = vadd.f32 0.0, %v205
    %v207 = vpop.f32.mrf.mxu0
    %208 = vdwg.mxu0
    %vm209 = vcmask 64512
    %v211 = vsel %vm209, 0, 0
    %vm213 = vcmask 1043456
    %v215 = vsel %vm213, %v67, 0
    %217 = vmatpush.bf16.msra.mxu0 0
    %218 = vmatpush.bf16.msra.mxu0 0
    %219 = vmatpush.bf16.msra.mxu0 0
    %220 = vmatpush.bf16.msra.mxu0 0
    %221 = vmatpush.bf16.msra.mxu0 0
    %222 = vmatpush.bf16.msra.mxu0 0
    %223 = vmatpush.bf16.msra.mxu0 0
    %224 = vmatpush.bf16.msra.mxu0 %v215
    %225 = vmatmul.bf16.gmra.mxu0 %v211
    %v226 = vpop.f32.mrf.mxu0
    %v227 = vadd.f32 0.0, %v226
    %v228 = vpop.f32.mrf.mxu0
    %229 = vdwg.mxu0
    %v230 = vadd.f32 %v206, %v227
    %v231 = vadd.f32 %v230, %v71
    %v232 = vadd.f32 %v231, %v231
    %v233 = vsel %vm112, %v232, %v231
    %v234 = vxor.u32 %v233, 2147483648
    %v235 = vmul.f32 %v234, 1.442695
    %v236 = vpow.pop %v235
    %v237 = vadd.f32 %v236, 1.0
    %v238 = vrcp.pop %v237
    %v239 = vmul.f32 %v237, %v238
    %v240 = vsub.f32 1.0, %v239
    %v241 = vmul.f32 %v238, %v240
    %v242 = vadd.f32 %v238, %v241
    %vm243 = vweird.f32 %v237
    %vm244 = vweird.f32 %v238
    %vm245 = vmor %vm243, %vm244
    %v246 = vsel %vm245, %v238, %v242
    %v247 = vand.u32 2147483647, %v237
    %vm248 = vcmp.eq.f32.partialorder %v247, 8.507059e+37
    %v249 = vand.u32 %v237, 2147483648
    %v250 = vor.u32 1.1754944e-38, %v249
    %v251 = vsel %vm248, %v250, %v246
    %v252 = vmul.f32 1.0, %v251
    %v253 = vadd.f32 %v252, %v252
    %v254 = vsub.f32 %v253, 1.0
    %v255 = vsel %vm112, %v254, %v252
    %v256 = vmul.f32 %v255, 0.0
    %258 = vrot.lane.b32.xlu0 %v255, 112
    %v259 = vpop.permute.xlu0 %258
    %v261 = vmul.f32 %v255, %v259
    %263 = vrot.lane.b32.xlu0 %v261, 8
    %v264 = vpop.permute.xlu0 %263
    %v266 = vadd.f32 %v256, %v264
    %v267 = vtanh.pop %v266
    %269 = vrot.lane.b32.xlu0 %v267, 16
    %v270 = vpop.permute.xlu0 %269
    %v272 = vmul.f32 %v255, %v270
    %v274 = vrot.slane %v193, 6
    %v276 = vadd.f32 %v101, %v274
    %v277 = vadd.f32 %v276, %v276
    %v278 = vsel %vm109, %v277, %v276
    %v279 = vxor.u32 %v278, 2147483648
    %v280 = vmul.f32 %v279, 1.442695
    %v281 = vpow.pop %v280
    %v282 = vadd.f32 %v281, 1.0
    %v283 = vrcp.pop %v282
    %v284 = vmul.f32 %v282, %v283
    %v285 = vsub.f32 1.0, %v284
    %v286 = vmul.f32 %v283, %v285
    %v287 = vadd.f32 %v283, %v286
    %vm288 = vweird.f32 %v282
    %vm289 = vweird.f32 %v283
    %vm290 = vmor %vm288, %vm289
    %v291 = vsel %vm290, %v283, %v287
    %v292 = vand.u32 2147483647, %v282
    %vm293 = vcmp.eq.f32.partialorder %v292, 8.507059e+37
    %v294 = vand.u32 %v282, 2147483648
    %v295 = vor.u32 1.1754944e-38, %v294
    %v296 = vsel %vm293, %v295, %v291
    %v297 = vmul.f32 1.0, %v296
    %v298 = vadd.f32 %v297, %v297
    %v299 = vsub.f32 %v298, 1.0
    %v300 = vsel %vm109, %v299, %v297
    %v302 = vrot.slane %v148, 6
    %v304 = vmul.f32 %v300, %v302
    %306 = vrot.lane.b32.xlu0 %v300, 64
    %v307 = vpop.permute.xlu0 %306
    %v309 = vmul.f32 %v300, %v307
    %311 = vrot.lane.b32.xlu0 %v309, 32
    %v312 = vpop.permute.xlu0 %311
    %v314 = vadd.f32 %v304, %v312
    %v315 = vtanh.pop %v314
    %317 = vrot.lane.b32.xlu0 %v315, 64
    %v318 = vpop.permute.xlu0 %317
    %v320 = vmul.f32 %v300, %v318
    %v321 = vpack.c.bf16 %v320, %v320
    %v323 = vrot.slane %v321, 1
    %324 = vrot.lane.b32.xlu0 %v323, 32
    %v325 = vpop.permute.xlu0 %324
    %v327 = vsel %vm179, %v325, 0
    %329 = vmatpush.bf16.msra.mxu0 0
    %330 = vmatpush.bf16.msra.mxu0 0
    %331 = vmatpush.bf16.msra.mxu0 0
    %332 = vmatpush.bf16.msra.mxu0 0
    %333 = vmatpush.bf16.msra.mxu0 0
    %334 = vmatpush.bf16.msra.mxu0 0
    %335 = vmatpush.bf16.msra.mxu0 %v173
    %336 = vmatpush.bf16.msra.mxu0 %v171
    %337 = vmatmul.bf16.gmra.mxu0 %v327
    %v338 = vpop.f32.mrf.mxu0
    %v339 = vadd.f32 0.0, %v338
    %v340 = vpop.f32.mrf.mxu0
    %341 = vdwg.mxu0
    %342 = vmatpush.bf16.msra.mxu0 0
    %343 = vmatpush.bf16.msra.mxu0 0
    %344 = vmatpush.bf16.msra.mxu0 0
    %345 = vmatpush.bf16.msra.mxu0 0
    %346 = vmatpush.bf16.msra.mxu0 0
    %347 = vmatpush.bf16.msra.mxu0 0
    %348 = vmatpush.bf16.msra.mxu0 %v174
    %349 = vmatpush.bf16.msra.mxu0 %v172
    %350 = vmatmul.bf16.gmra.mxu0 %v327
    %v351 = vpop.f32.mrf.mxu0
    %v352 = vadd.f32 0.0, %v351
    %v353 = vpop.f32.mrf.mxu0
    %354 = vdwg.mxu0
    %v355 = vpack.c.bf16 %v272, %v272
    %357 = vrot.lane.b32.xlu0 %v355, 104
    %v358 = vpop.permute.xlu0 %357
    %v360 = vsel %vm209, %v358, 0
    %362 = vmatpush.bf16.msra.mxu0 0
    %363 = vmatpush.bf16.msra.mxu0 0
    %364 = vmatpush.bf16.msra.mxu0 0
    %365 = vmatpush.bf16.msra.mxu0 0
    %366 = vmatpush.bf16.msra.mxu0 0
    %367 = vmatpush.bf16.msra.mxu0 0
    %368 = vmatpush.bf16.msra.mxu0 0
    %369 = vmatpush.bf16.msra.mxu0 %v215
    %370 = vmatmul.bf16.gmra.mxu0 %v360
    %v371 = vpop.f32.mrf.mxu0
    %v372 = vadd.f32 0.0, %v371
    %v373 = vpop.f32.mrf.mxu0
    %374 = vdwg.mxu0
    %v375 = vadd.f32 %v352, %v372
    %v376 = vadd.f32 %v375, %v71
    %v377 = vadd.f32 %v376, %v376
    %v378 = vsel %vm112, %v377, %v376
    %v379 = vxor.u32 %v378, 2147483648
    %v380 = vmul.f32 %v379, 1.442695
    %v381 = vpow.pop %v380
    %v382 = vadd.f32 %v381, 1.0
    %v383 = vrcp.pop %v382
    %v384 = vmul.f32 %v382, %v383
    %v385 = vsub.f32 1.0, %v384
    %v386 = vmul.f32 %v383, %v385
    %v387 = vadd.f32 %v383, %v386
    %vm388 = vweird.f32 %v382
    %vm389 = vweird.f32 %v383
    %vm390 = vmor %vm388, %vm389
    %v391 = vsel %vm390, %v383, %v387
    %v392 = vand.u32 2147483647, %v382
    %vm393 = vcmp.eq.f32.partialorder %v392, 8.507059e+37
    %v394 = vand.u32 %v382, 2147483648
    %v395 = vor.u32 1.1754944e-38, %v394
    %v396 = vsel %vm393, %v395, %v391
    %v397 = vmul.f32 1.0, %v396
    %v398 = vadd.f32 %v397, %v397
    %v399 = vsub.f32 %v398, 1.0
    %v400 = vsel %vm112, %v399, %v397
    %v401 = vmul.f32 %v400, %v266
    %403 = vrot.lane.b32.xlu0 %v400, 112
    %v404 = vpop.permute.xlu0 %403
    %v406 = vmul.f32 %v400, %v404
    %408 = vrot.lane.b32.xlu0 %v406, 8
    %v409 = vpop.permute.xlu0 %408
    %v411 = vadd.f32 %v401, %v409
    %v412 = vtanh.pop %v411
    %414 = vrot.lane.b32.xlu0 %v412, 16
    %v415 = vpop.permute.xlu0 %414
    %v417 = vmul.f32 %v400, %v415
    %v419 = vrot.slane %v339, 4
    %v421 = vadd.f32 %v101, %v419
    %v422 = vadd.f32 %v421, %v421
    %v423 = vsel %vm109, %v422, %v421
    %v424 = vxor.u32 %v423, 2147483648
    %v425 = vmul.f32 %v424, 1.442695
    %v426 = vpow.pop %v425
    %v427 = vadd.f32 %v426, 1.0
    %v428 = vrcp.pop %v427
    %v429 = vmul.f32 %v427, %v428
    %v430 = vsub.f32 1.0, %v429
    %v431 = vmul.f32 %v428, %v430
    %v432 = vadd.f32 %v428, %v431
    %vm433 = vweird.f32 %v427
    %vm434 = vweird.f32 %v428
    %vm435 = vmor %vm433, %vm434
    %v436 = vsel %vm435, %v428, %v432
    %v437 = vand.u32 2147483647, %v427
    %vm438 = vcmp.eq.f32.partialorder %v437, 8.507059e+37
    %v439 = vand.u32 %v427, 2147483648
    %v440 = vor.u32 1.1754944e-38, %v439
    %v441 = vsel %vm438, %v440, %v436
    %v442 = vmul.f32 1.0, %v441
    %v443 = vadd.f32 %v442, %v442
    %v444 = vsub.f32 %v443, 1.0
    %v445 = vsel %vm109, %v444, %v442
    %v447 = vrot.slane %v314, 6
    %v449 = vmul.f32 %v445, %v447
    %451 = vrot.lane.b32.xlu0 %v445, 64
    %v452 = vpop.permute.xlu0 %451
    %v454 = vmul.f32 %v445, %v452
    %456 = vrot.lane.b32.xlu0 %v454, 32
    %v457 = vpop.permute.xlu0 %456
    %v459 = vadd.f32 %v449, %v457
    %v460 = vtanh.pop %v459
    %462 = vrot.lane.b32.xlu0 %v460, 64
    %v463 = vpop.permute.xlu0 %462
    %v465 = vmul.f32 %v445, %v463
    %v466 = vpack.c.bf16 %v465, %v465
    %v468 = vrot.slane %v466, 2
    %469 = vrot.lane.b32.xlu0 %v468, 32
    %v470 = vpop.permute.xlu0 %469
    %v472 = vsel %vm179, %v470, 0
    %474 = vmatpush.bf16.msra.mxu0 0
    %475 = vmatpush.bf16.msra.mxu0 0
    %476 = vmatpush.bf16.msra.mxu0 0
    %477 = vmatpush.bf16.msra.mxu0 0
    %478 = vmatpush.bf16.msra.mxu0 0
    %479 = vmatpush.bf16.msra.mxu0 0
    %480 = vmatpush.bf16.msra.mxu0 %v173
    %481 = vmatpush.bf16.msra.mxu0 %v171
    %482 = vmatmul.bf16.gmra.mxu0 %v472
    %v483 = vpop.f32.mrf.mxu0
    %v484 = vadd.f32 0.0, %v483
    %v485 = vpop.f32.mrf.mxu0
    %486 = vdwg.mxu0
    %487 = vmatpush.bf16.msra.mxu0 0
    %488 = vmatpush.bf16.msra.mxu0 0
    %489 = vmatpush.bf16.msra.mxu0 0
    %490 = vmatpush.bf16.msra.mxu0 0
    %491 = vmatpush.bf16.msra.mxu0 0
    %492 = vmatpush.bf16.msra.mxu0 0
    %493 = vmatpush.bf16.msra.mxu0 %v174
    %494 = vmatpush.bf16.msra.mxu0 %v172
    %495 = vmatmul.bf16.gmra.mxu0 %v472
    %v496 = vpop.f32.mrf.mxu0
    %v497 = vadd.f32 0.0, %v496
    %v498 = vpop.f32.mrf.mxu0
    %499 = vdwg.mxu0
    %v500 = vpack.c.bf16 %v417, %v417
    %502 = vrot.lane.b32.xlu0 %v500, 104
    %v503 = vpop.permute.xlu0 %502
    %v505 = vsel %vm209, %v503, 0
    %507 = vmatpush.bf16.msra.mxu0 0
    %508 = vmatpush.bf16.msra.mxu0 0
    %509 = vmatpush.bf16.msra.mxu0 0
    %510 = vmatpush.bf16.msra.mxu0 0
    %511 = vmatpush.bf16.msra.mxu0 0
    %512 = vmatpush.bf16.msra.mxu0 0
    %513 = vmatpush.bf16.msra.mxu0 0
    %514 = vmatpush.bf16.msra.mxu0 %v215
    %515 = vmatmul.bf16.gmra.mxu0 %v505
    %v516 = vpop.f32.mrf.mxu0
    %v517 = vadd.f32 0.0, %v516
    %v518 = vpop.f32.mrf.mxu0
    %519 = vdwg.mxu0
    %v520 = vadd.f32 %v497, %v517
    %v521 = vadd.f32 %v520, %v71
    %v522 = vadd.f32 %v521, %v521
    %v523 = vsel %vm112, %v522, %v521
    %v524 = vxor.u32 %v523, 2147483648
    %v525 = vmul.f32 %v524, 1.442695
    %v526 = vpow.pop %v525
    %v527 = vadd.f32 %v526, 1.0
    %v528 = vrcp.pop %v527
    %v529 = vmul.f32 %v527, %v528
    %v530 = vsub.f32 1.0, %v529
    %v531 = vmul.f32 %v528, %v530
    %v532 = vadd.f32 %v528, %v531
    %vm533 = vweird.f32 %v527
    %vm534 = vweird.f32 %v528
    %vm535 = vmor %vm533, %vm534
    %v536 = vsel %vm535, %v528, %v532
    %v537 = vand.u32 2147483647, %v527
    %vm538 = vcmp.eq.f32.partialorder %v537, 8.507059e+37
    %v539 = vand.u32 %v527, 2147483648
    %v540 = vor.u32 1.1754944e-38, %v539
    %v541 = vsel %vm538, %v540, %v536
    %v542 = vmul.f32 1.0, %v541
    %v543 = vadd.f32 %v542, %v542
    %v544 = vsub.f32 %v543, 1.0
    %v545 = vsel %vm112, %v544, %v542
    %v546 = vmul.f32 %v545, %v411
    %548 = vrot.lane.b32.xlu0 %v545, 112
    %v549 = vpop.permute.xlu0 %548
    %v551 = vmul.f32 %v545, %v549
    %553 = vrot.lane.b32.xlu0 %v551, 8
    %v554 = vpop.permute.xlu0 %553
    %v556 = vadd.f32 %v546, %v554
    %v557 = vtanh.pop %v556
    %559 = vrot.lane.b32.xlu0 %v557, 16
    %v560 = vpop.permute.xlu0 %559
    %v562 = vmul.f32 %v545, %v560
    %v564 = vrot.slane %v484, 2
    %v566 = vadd.f32 %v101, %v564
    %v567 = vadd.f32 %v566, %v566
    %v568 = vsel %vm109, %v567, %v566
    %v569 = vxor.u32 %v568, 2147483648
    %v570 = vmul.f32 %v569, 1.442695
    %v571 = vpow.pop %v570
    %v572 = vadd.f32 %v571, 1.0
    %v573 = vrcp.pop %v572
    %v574 = vmul.f32 %v572, %v573
    %v575 = vsub.f32 1.0, %v574
    %v576 = vmul.f32 %v573, %v575
    %v577 = vadd.f32 %v573, %v576
    %vm578 = vweird.f32 %v572
    %vm579 = vweird.f32 %v573
    %vm580 = vmor %vm578, %vm579
    %v581 = vsel %vm580, %v573, %v577
    %v582 = vand.u32 2147483647, %v572
    %vm583 = vcmp.eq.f32.partialorder %v582, 8.507059e+37
    %v584 = vand.u32 %v572, 2147483648
    %v585 = vor.u32 1.1754944e-38, %v584
    %v586 = vsel %vm583, %v585, %v581
    %v587 = vmul.f32 1.0, %v586
    %v588 = vadd.f32 %v587, %v587
    %v589 = vsub.f32 %v588, 1.0
    %v590 = vsel %vm109, %v589, %v587
    %v592 = vrot.slane %v459, 6
    %v594 = vmul.f32 %v590, %v592
    %596 = vrot.lane.b32.xlu0 %v590, 64
    %v597 = vpop.permute.xlu0 %596
    %v599 = vmul.f32 %v590, %v597
    %601 = vrot.lane.b32.xlu0 %v599, 32
    %v602 = vpop.permute.xlu0 %601
    %v604 = vadd.f32 %v594, %v602
    %v605 = vtanh.pop %v604
    %607 = vrot.lane.b32.xlu0 %v605, 64
    %v608 = vpop.permute.xlu0 %607
    %v610 = vmul.f32 %v590, %v608
    %v611 = vpack.c.bf16 %v610, %v610
    %v613 = vrot.slane %v611, 3
    %614 = vrot.lane.b32.xlu0 %v613, 32
    %v615 = vpop.permute.xlu0 %614
    %v617 = vsel %vm179, %v615, 0
    %619 = vmatpush.bf16.msra.mxu0 0
    %620 = vmatpush.bf16.msra.mxu0 0
    %621 = vmatpush.bf16.msra.mxu0 0
    %622 = vmatpush.bf16.msra.mxu0 0
    %623 = vmatpush.bf16.msra.mxu0 0
    %624 = vmatpush.bf16.msra.mxu0 0
    %625 = vmatpush.bf16.msra.mxu0 %v173
    %626 = vmatpush.bf16.msra.mxu0 %v171
    %627 = vmatmul.bf16.gmra.mxu0 %v617
    %v628 = vpop.f32.mrf.mxu0
    %v629 = vadd.f32 0.0, %v628
    %v630 = vpop.f32.mrf.mxu0
    %631 = vdwg.mxu0
    %632 = vmatpush.bf16.msra.mxu0 0
    %633 = vmatpush.bf16.msra.mxu0 0
    %634 = vmatpush.bf16.msra.mxu0 0
    %635 = vmatpush.bf16.msra.mxu0 0
    %636 = vmatpush.bf16.msra.mxu0 0
    %637 = vmatpush.bf16.msra.mxu0 0
    %638 = vmatpush.bf16.msra.mxu0 %v174
    %639 = vmatpush.bf16.msra.mxu0 %v172
    %640 = vmatmul.bf16.gmra.mxu0 %v617
    %v641 = vpop.f32.mrf.mxu0
    %v642 = vadd.f32 0.0, %v641
    %v643 = vpop.f32.mrf.mxu0
    %644 = vdwg.mxu0
    %v645 = vpack.c.bf16 %v562, %v562
    %647 = vrot.lane.b32.xlu0 %v645, 104
    %v648 = vpop.permute.xlu0 %647
    %v650 = vsel %vm209, %v648, 0
    %652 = vmatpush.bf16.msra.mxu0 0
    %653 = vmatpush.bf16.msra.mxu0 0
    %654 = vmatpush.bf16.msra.mxu0 0
    %655 = vmatpush.bf16.msra.mxu0 0
    %656 = vmatpush.bf16.msra.mxu0 0
    %657 = vmatpush.bf16.msra.mxu0 0
    %658 = vmatpush.bf16.msra.mxu0 0
    %659 = vmatpush.bf16.msra.mxu0 %v215
    %660 = vmatmul.bf16.gmra.mxu0 %v650
    %v661 = vpop.f32.mrf.mxu0
    %v662 = vadd.f32 0.0, %v661
    %v663 = vpop.f32.mrf.mxu0
    %664 = vdwg.mxu0
    %v665 = vadd.f32 %v642, %v662
    %v666 = vadd.f32 %v665, %v71
    %v667 = vadd.f32 %v666, %v666
    %v668 = vsel %vm112, %v667, %v666
    %v669 = vxor.u32 %v668, 2147483648
    %v670 = vmul.f32 %v669, 1.442695
    %v671 = vpow.pop %v670
    %v672 = vadd.f32 %v671, 1.0
    %v673 = vrcp.pop %v672
    %v674 = vmul.f32 %v672, %v673
    %v675 = vsub.f32 1.0, %v674
    %v676 = vmul.f32 %v673, %v675
    %v677 = vadd.f32 %v673, %v676
    %vm678 = vweird.f32 %v672
    %vm679 = vweird.f32 %v673
    %vm680 = vmor %vm678, %vm679
    %v681 = vsel %vm680, %v673, %v677
    %v682 = vand.u32 2147483647, %v672
    %vm683 = vcmp.eq.f32.partialorder %v682, 8.507059e+37
    %v684 = vand.u32 %v672, 2147483648
    %v685 = vor.u32 1.1754944e-38, %v684
    %v686 = vsel %vm683, %v685, %v681
    %v687 = vmul.f32 1.0, %v686
    %v688 = vadd.f32 %v687, %v687
    %v689 = vsub.f32 %v688, 1.0
    %v690 = vsel %vm112, %v689, %v687
    %v691 = vmul.f32 %v690, %v556
    %693 = vrot.lane.b32.xlu0 %v690, 112
    %v694 = vpop.permute.xlu0 %693
    %v696 = vmul.f32 %v690, %v694
    %698 = vrot.lane.b32.xlu0 %v696, 8
    %v699 = vpop.permute.xlu0 %698
    %v701 = vadd.f32 %v691, %v699
    %v702 = vtanh.pop %v701
    %704 = vrot.lane.b32.xlu0 %v702, 16
    %v705 = vpop.permute.xlu0 %704
    %v707 = vmul.f32 %v690, %v705
    %v708 = vadd.f32 %v103, %v629
    %v709 = vadd.f32 %v708, %v708
    %v710 = vsel %vm109, %v709, %v708
    %v711 = vxor.u32 %v710, 2147483648
    %v712 = vmul.f32 %v711, 1.442695
    %v713 = vpow.pop %v712
    %v714 = vadd.f32 %v713, 1.0
    %v715 = vrcp.pop %v714
    %v716 = vmul.f32 %v714, %v715
    %v717 = vsub.f32 1.0, %v716
    %v718 = vmul.f32 %v715, %v717
    %v719 = vadd.f32 %v715, %v718
    %vm720 = vweird.f32 %v714
    %vm721 = vweird.f32 %v715
    %vm722 = vmor %vm720, %vm721
    %v723 = vsel %vm722, %v715, %v719
    %v724 = vand.u32 2147483647, %v714
    %vm725 = vcmp.eq.f32.partialorder %v724, 8.507059e+37
    %v726 = vand.u32 %v714, 2147483648
    %v727 = vor.u32 1.1754944e-38, %v726
    %v728 = vsel %vm725, %v727, %v723
    %v729 = vmul.f32 1.0, %v728
    %v730 = vadd.f32 %v729, %v729
    %v731 = vsub.f32 %v730, 1.0
    %v732 = vsel %vm109, %v731, %v729
    %v734 = vrot.slane %v604, 6
    %v736 = vmul.f32 %v732, %v734
    %738 = vrot.lane.b32.xlu0 %v732, 64
    %v739 = vpop.permute.xlu0 %738
    %v741 = vmul.f32 %v732, %v739
    %743 = vrot.lane.b32.xlu0 %v741, 32
    %v744 = vpop.permute.xlu0 %743
    %v746 = vadd.f32 %v736, %v744
    %v747 = vtanh.pop %v746
    %749 = vrot.lane.b32.xlu0 %v747, 64
    %v750 = vpop.permute.xlu0 %749
    %v752 = vmul.f32 %v732, %v750
    %v753 = vpack.c.bf16 %v752, %v752
    %755 = vrot.lane.b32.xlu0 %v753, 32
    %v756 = vpop.permute.xlu0 %755
    %v758 = vsel %vm179, %v756, 0
    %760 = vmatpush.bf16.msra.mxu0 0
    %761 = vmatpush.bf16.msra.mxu0 0
    %762 = vmatpush.bf16.msra.mxu0 0
    %763 = vmatpush.bf16.msra.mxu0 0
    %764 = vmatpush.bf16.msra.mxu0 0
    %765 = vmatpush.bf16.msra.mxu0 0
    %766 = vmatpush.bf16.msra.mxu0 %v173
    %767 = vmatpush.bf16.msra.mxu0 %v171
    %768 = vmatmul.bf16.gmra.mxu0 %v758
    %v769 = vpop.f32.mrf.mxu0
    %v770 = vadd.f32 0.0, %v769
    %v771 = vpop.f32.mrf.mxu0
    %772 = vdwg.mxu0
    %773 = vmatpush.bf16.msra.mxu0 0
    %774 = vmatpush.bf16.msra.mxu0 0
    %775 = vmatpush.bf16.msra.mxu0 0
    %776 = vmatpush.bf16.msra.mxu0 0
    %777 = vmatpush.bf16.msra.mxu0 0
    %778 = vmatpush.bf16.msra.mxu0 0
    %779 = vmatpush.bf16.msra.mxu0 %v174
    %780 = vmatpush.bf16.msra.mxu0 %v172
    %781 = vmatmul.bf16.gmra.mxu0 %v758
    %v782 = vpop.f32.mrf.mxu0
    %v783 = vadd.f32 0.0, %v782
    %v784 = vpop.f32.mrf.mxu0
    %785 = vdwg.mxu0
    %v786 = vpack.c.bf16 %v707, %v707
    %788 = vrot.lane.b32.xlu0 %v786, 104
    %v789 = vpop.permute.xlu0 %788
    %v791 = vsel %vm209, %v789, 0
    %793 = vmatpush.bf16.msra.mxu0 0
    %794 = vmatpush.bf16.msra.mxu0 0
    %795 = vmatpush.bf16.msra.mxu0 0
    %796 = vmatpush.bf16.msra.mxu0 0
    %797 = vmatpush.bf16.msra.mxu0 0
    %798 = vmatpush.bf16.msra.mxu0 0
    %799 = vmatpush.bf16.msra.mxu0 0
    %800 = vmatpush.bf16.msra.mxu0 %v215
    %801 = vmatmul.bf16.gmra.mxu0 %v791
    %v802 = vpop.f32.mrf.mxu0
    %v803 = vadd.f32 0.0, %v802
    %v804 = vpop.f32.mrf.mxu0
    %805 = vdwg.mxu0
    %v806 = vadd.f32 %v783, %v803
    %v807 = vadd.f32 %v806, %v71
    %v808 = vadd.f32 %v807, %v807
    %v809 = vsel %vm112, %v808, %v807
    %v810 = vxor.u32 %v809, 2147483648
    %v811 = vmul.f32 %v810, 1.442695
    %v812 = vpow.pop %v811
    %v813 = vadd.f32 %v812, 1.0
    %v814 = vrcp.pop %v813
    %v815 = vmul.f32 %v813, %v814
    %v816 = vsub.f32 1.0, %v815
    %v817 = vmul.f32 %v814, %v816
    %v818 = vadd.f32 %v814, %v817
    %vm819 = vweird.f32 %v813
    %vm820 = vweird.f32 %v814
    %vm821 = vmor %vm819, %vm820
    %v822 = vsel %vm821, %v814, %v818
    %v823 = vand.u32 2147483647, %v813
    %vm824 = vcmp.eq.f32.partialorder %v823, 8.507059e+37
    %v825 = vand.u32 %v813, 2147483648
    %v826 = vor.u32 1.1754944e-38, %v825
    %v827 = vsel %vm824, %v826, %v822
    %v828 = vmul.f32 1.0, %v827
    %v829 = vadd.f32 %v828, %v828
    %v830 = vsub.f32 %v829, 1.0
    %v831 = vsel %vm112, %v830, %v828
    %v832 = vmul.f32 %v831, %v701
    %834 = vrot.lane.b32.xlu0 %v831, 112
    %v835 = vpop.permute.xlu0 %834
    %v837 = vmul.f32 %v831, %v835
    %839 = vrot.lane.b32.xlu0 %v837, 8
    %v840 = vpop.permute.xlu0 %839
    %v842 = vadd.f32 %v832, %v840
    %v843 = vtanh.pop %v842
    %845 = vrot.lane.b32.xlu0 %v843, 16
    %v846 = vpop.permute.xlu0 %845
    %v848 = vmul.f32 %v831, %v846
    %v850 = vrot.slane %v770, 6
    %v852 = vadd.f32 %v103, %v850
    %v853 = vadd.f32 %v852, %v852
    %v854 = vsel %vm109, %v853, %v852
    %v855 = vxor.u32 %v854, 2147483648
    %v856 = vmul.f32 %v855, 1.442695
    %v857 = vpow.pop %v856
    %v858 = vadd.f32 %v857, 1.0
    %v859 = vrcp.pop %v858
    %v860 = vmul.f32 %v858, %v859
    %v861 = vsub.f32 1.0, %v860
    %v862 = vmul.f32 %v859, %v861
    %v863 = vadd.f32 %v859, %v862
    %vm864 = vweird.f32 %v858
    %vm865 = vweird.f32 %v859
    %vm866 = vmor %vm864, %vm865
    %v867 = vsel %vm866, %v859, %v863
    %v868 = vand.u32 2147483647, %v858
    %vm869 = vcmp.eq.f32.partialorder %v868, 8.507059e+37
    %v870 = vand.u32 %v858, 2147483648
    %v871 = vor.u32 1.1754944e-38, %v870
    %v872 = vsel %vm869, %v871, %v867
    %v873 = vmul.f32 1.0, %v872
    %v874 = vadd.f32 %v873, %v873
    %v875 = vsub.f32 %v874, 1.0
    %v876 = vsel %vm109, %v875, %v873
    %v878 = vrot.slane %v746, 6
    %v880 = vmul.f32 %v876, %v878
    %882 = vrot.lane.b32.xlu0 %v876, 64
    %v883 = vpop.permute.xlu0 %882
    %v885 = vmul.f32 %v876, %v883
    %887 = vrot.lane.b32.xlu0 %v885, 32
    %v888 = vpop.permute.xlu0 %887
    %v890 = vadd.f32 %v880, %v888
    %v891 = vtanh.pop %v890
    %893 = vrot.lane.b32.xlu0 %v891, 64
    %v894 = vpop.permute.xlu0 %893
    %v896 = vmul.f32 %v876, %v894
    %v897 = vpack.c.bf16 %v896, %v896
    %v899 = vrot.slane %v897, 1
    %900 = vrot.lane.b32.xlu0 %v899, 32
    %v901 = vpop.permute.xlu0 %900
    %v903 = vsel %vm179, %v901, 0
    %905 = vmatpush.bf16.msra.mxu0 0
    %906 = vmatpush.bf16.msra.mxu0 0
    %907 = vmatpush.bf16.msra.mxu0 0
    %908 = vmatpush.bf16.msra.mxu0 0
    %909 = vmatpush.bf16.msra.mxu0 0
    %910 = vmatpush.bf16.msra.mxu0 0
    %911 = vmatpush.bf16.msra.mxu0 %v173
    %912 = vmatpush.bf16.msra.mxu0 %v171
    %913 = vmatmul.bf16.gmra.mxu0 %v903
    %v914 = vpop.f32.mrf.mxu0
    %v915 = vadd.f32 0.0, %v914
    %v916 = vpop.f32.mrf.mxu0
    %917 = vdwg.mxu0
    %918 = vmatpush.bf16.msra.mxu0 0
    %919 = vmatpush.bf16.msra.mxu0 0
    %920 = vmatpush.bf16.msra.mxu0 0
    %921 = vmatpush.bf16.msra.mxu0 0
    %922 = vmatpush.bf16.msra.mxu0 0
    %923 = vmatpush.bf16.msra.mxu0 0
    %924 = vmatpush.bf16.msra.mxu0 %v174
    %925 = vmatpush.bf16.msra.mxu0 %v172
    %926 = vmatmul.bf16.gmra.mxu0 %v903
    %v927 = vpop.f32.mrf.mxu0
    %v928 = vadd.f32 0.0, %v927
    %v929 = vpop.f32.mrf.mxu0
    %930 = vdwg.mxu0
    %v931 = vpack.c.bf16 %v848, %v848
    %933 = vrot.lane.b32.xlu0 %v931, 104
    %v934 = vpop.permute.xlu0 %933
    %v936 = vsel %vm209, %v934, 0
    %938 = vmatpush.bf16.msra.mxu0 0
    %939 = vmatpush.bf16.msra.mxu0 0
    %940 = vmatpush.bf16.msra.mxu0 0
    %941 = vmatpush.bf16.msra.mxu0 0
    %942 = vmatpush.bf16.msra.mxu0 0
    %943 = vmatpush.bf16.msra.mxu0 0
    %944 = vmatpush.bf16.msra.mxu0 0
    %945 = vmatpush.bf16.msra.mxu0 %v215
    %946 = vmatmul.bf16.gmra.mxu0 %v936
    %v947 = vpop.f32.mrf.mxu0
    %v948 = vadd.f32 0.0, %v947
    %v949 = vpop.f32.mrf.mxu0
    %950 = vdwg.mxu0
    %v951 = vadd.f32 %v928, %v948
    %v952 = vadd.f32 %v951, %v71
    %v953 = vadd.f32 %v952, %v952
    %v954 = vsel %vm112, %v953, %v952
    %v955 = vxor.u32 %v954, 2147483648
    %v956 = vmul.f32 %v955, 1.442695
    %v957 = vpow.pop %v956
    %v958 = vadd.f32 %v957, 1.0
    %v959 = vrcp.pop %v958
    %v960 = vmul.f32 %v958, %v959
    %v961 = vsub.f32 1.0, %v960
    %v962 = vmul.f32 %v959, %v961
    %v963 = vadd.f32 %v959, %v962
    %vm964 = vweird.f32 %v958
    %vm965 = vweird.f32 %v959
    %vm966 = vmor %vm964, %vm965
    %v967 = vsel %vm966, %v959, %v963
    %v968 = vand.u32 2147483647, %v958
    %vm969 = vcmp.eq.f32.partialorder %v968, 8.507059e+37
    %v970 = vand.u32 %v958, 2147483648
    %v971 = vor.u32 1.1754944e-38, %v970
    %v972 = vsel %vm969, %v971, %v967
    %v973 = vmul.f32 1.0, %v972
    %v974 = vadd.f32 %v973, %v973
    %v975 = vsub.f32 %v974, 1.0
    %v976 = vsel %vm112, %v975, %v973
    %v977 = vmul.f32 %v976, %v842
    %979 = vrot.lane.b32.xlu0 %v976, 112
    %v980 = vpop.permute.xlu0 %979
    %v982 = vmul.f32 %v976, %v980
    %984 = vrot.lane.b32.xlu0 %v982, 8
    %v985 = vpop.permute.xlu0 %984
    %v987 = vadd.f32 %v977, %v985
    %v988 = vtanh.pop %v987
    %990 = vrot.lane.b32.xlu0 %v988, 16
    %v991 = vpop.permute.xlu0 %990
    %v993 = vmul.f32 %v976, %v991
    %v995 = vrot.slane %v915, 4
    %v997 = vadd.f32 %v103, %v995
    %v998 = vadd.f32 %v997, %v997
    %v999 = vsel %vm109, %v998, %v997
    %v1000 = vxor.u32 %v999, 2147483648
    %v1001 = vmul.f32 %v1000, 1.442695
    %v1002 = vpow.pop %v1001
    %v1003 = vadd.f32 %v1002, 1.0
    %v1004 = vrcp.pop %v1003
    %v1005 = vmul.f32 %v1003, %v1004
    %v1006 = vsub.f32 1.0, %v1005
    %v1007 = vmul.f32 %v1004, %v1006
    %v1008 = vadd.f32 %v1004, %v1007
    %vm1009 = vweird.f32 %v1003
    %vm1010 = vweird.f32 %v1004
    %vm1011 = vmor %vm1009, %vm1010
    %v1012 = vsel %vm1011, %v1004, %v1008
    %v1013 = vand.u32 2147483647, %v1003
    %vm1014 = vcmp.eq.f32.partialorder %v1013, 8.507059e+37
    %v1015 = vand.u32 %v1003, 2147483648
    %v1016 = vor.u32 1.1754944e-38, %v1015
    %v1017 = vsel %vm1014, %v1016, %v1012
    %v1018 = vmul.f32 1.0, %v1017
    %v1019 = vadd.f32 %v1018, %v1018
    %v1020 = vsub.f32 %v1019, 1.0
    %v1021 = vsel %vm109, %v1020, %v1018
    %v1023 = vrot.slane %v890, 6
    %v1025 = vmul.f32 %v1021, %v1023
    %1027 = vrot.lane.b32.xlu0 %v1021, 64
    %v1028 = vpop.permute.xlu0 %1027
    %v1030 = vmul.f32 %v1021, %v1028
    %1032 = vrot.lane.b32.xlu0 %v1030, 32
    %v1033 = vpop.permute.xlu0 %1032
    %v1035 = vadd.f32 %v1025, %v1033
    %v1036 = vtanh.pop %v1035
    %1038 = vrot.lane.b32.xlu0 %v1036, 64
    %v1039 = vpop.permute.xlu0 %1038
    %v1041 = vmul.f32 %v1021, %v1039
    %v1042 = vpack.c.bf16 %v1041, %v1041
    %v1044 = vrot.slane %v1042, 2
    %1045 = vrot.lane.b32.xlu0 %v1044, 32
    %v1046 = vpop.permute.xlu0 %1045
    %v1048 = vsel %vm179, %v1046, 0
    %1050 = vmatpush.bf16.msra.mxu0 0
    %1051 = vmatpush.bf16.msra.mxu0 0
    %1052 = vmatpush.bf16.msra.mxu0 0
    %1053 = vmatpush.bf16.msra.mxu0 0
    %1054 = vmatpush.bf16.msra.mxu0 0
    %1055 = vmatpush.bf16.msra.mxu0 0
    %1056 = vmatpush.bf16.msra.mxu0 %v173
    %1057 = vmatpush.bf16.msra.mxu0 %v171
    %1058 = vmatmul.bf16.gmra.mxu0 %v1048
    %v1059 = vpop.f32.mrf.mxu0
    %v1060 = vadd.f32 0.0, %v1059
    %v1061 = vpop.f32.mrf.mxu0
    %1062 = vdwg.mxu0
    %1063 = vmatpush.bf16.msra.mxu0 0
    %1064 = vmatpush.bf16.msra.mxu0 0
    %1065 = vmatpush.bf16.msra.mxu0 0
    %1066 = vmatpush.bf16.msra.mxu0 0
    %1067 = vmatpush.bf16.msra.mxu0 0
    %1068 = vmatpush.bf16.msra.mxu0 0
    %1069 = vmatpush.bf16.msra.mxu0 %v174
    %1070 = vmatpush.bf16.msra.mxu0 %v172
    %1071 = vmatmul.bf16.gmra.mxu0 %v1048
    %v1072 = vpop.f32.mrf.mxu0
    %v1073 = vadd.f32 0.0, %v1072
    %v1074 = vpop.f32.mrf.mxu0
    %1075 = vdwg.mxu0
    %v1076 = vpack.c.bf16 %v993, %v993
    %1078 = vrot.lane.b32.xlu0 %v1076, 104
    %v1079 = vpop.permute.xlu0 %1078
    %v1081 = vsel %vm209, %v1079, 0
    %1083 = vmatpush.bf16.msra.mxu0 0
    %1084 = vmatpush.bf16.msra.mxu0 0
    %1085 = vmatpush.bf16.msra.mxu0 0
    %1086 = vmatpush.bf16.msra.mxu0 0
    %1087 = vmatpush.bf16.msra.mxu0 0
    %1088 = vmatpush.bf16.msra.mxu0 0
    %1089 = vmatpush.bf16.msra.mxu0 0
    %1090 = vmatpush.bf16.msra.mxu0 %v215
    %1091 = vmatmul.bf16.gmra.mxu0 %v1081
    %v1092 = vpop.f32.mrf.mxu0
    %v1093 = vadd.f32 0.0, %v1092
    %v1094 = vpop.f32.mrf.mxu0
    %1095 = vdwg.mxu0
    %v1096 = vadd.f32 %v1073, %v1093
    %v1097 = vadd.f32 %v1096, %v71
    %v1098 = vadd.f32 %v1097, %v1097
    %v1099 = vsel %vm112, %v1098, %v1097
    %v1100 = vxor.u32 %v1099, 2147483648
    %v1101 = vmul.f32 %v1100, 1.442695
    %v1102 = vpow.pop %v1101
    %v1103 = vadd.f32 %v1102, 1.0
    %v1104 = vrcp.pop %v1103
    %v1105 = vmul.f32 %v1103, %v1104
    %v1106 = vsub.f32 1.0, %v1105
    %v1107 = vmul.f32 %v1104, %v1106
    %v1108 = vadd.f32 %v1104, %v1107
    %vm1109 = vweird.f32 %v1103
    %vm1110 = vweird.f32 %v1104
    %vm1111 = vmor %vm1109, %vm1110
    %v1112 = vsel %vm1111, %v1104, %v1108
    %v1113 = vand.u32 2147483647, %v1103
    %vm1114 = vcmp.eq.f32.partialorder %v1113, 8.507059e+37
    %v1115 = vand.u32 %v1103, 2147483648
    %v1116 = vor.u32 1.1754944e-38, %v1115
    %v1117 = vsel %vm1114, %v1116, %v1112
    %v1118 = vmul.f32 1.0, %v1117
    %v1119 = vadd.f32 %v1118, %v1118
    %v1120 = vsub.f32 %v1119, 1.0
    %v1121 = vsel %vm112, %v1120, %v1118
    %v1122 = vmul.f32 %v1121, %v987
    %1124 = vrot.lane.b32.xlu0 %v1121, 112
    %v1125 = vpop.permute.xlu0 %1124
    %v1127 = vmul.f32 %v1121, %v1125
    %1129 = vrot.lane.b32.xlu0 %v1127, 8
    %v1130 = vpop.permute.xlu0 %1129
    %v1132 = vadd.f32 %v1122, %v1130
    %v1133 = vtanh.pop %v1132
    %1135 = vrot.lane.b32.xlu0 %v1133, 16
    %v1136 = vpop.permute.xlu0 %1135
    %v1138 = vmul.f32 %v1121, %v1136
    %v1140 = vrot.slane %v1060, 2
    %v1142 = vadd.f32 %v103, %v1140
    %v1143 = vadd.f32 %v1142, %v1142
    %v1144 = vsel %vm109, %v1143, %v1142
    %v1145 = vxor.u32 %v1144, 2147483648
    %v1146 = vmul.f32 %v1145, 1.442695
    %v1147 = vpow.pop %v1146
    %v1148 = vadd.f32 %v1147, 1.0
    %v1149 = vrcp.pop %v1148
    %v1150 = vmul.f32 %v1148, %v1149
    %v1151 = vsub.f32 1.0, %v1150
    %v1152 = vmul.f32 %v1149, %v1151
    %v1153 = vadd.f32 %v1149, %v1152
    %vm1154 = vweird.f32 %v1148
    %vm1155 = vweird.f32 %v1149
    %vm1156 = vmor %vm1154, %vm1155
    %v1157 = vsel %vm1156, %v1149, %v1153
    %v1158 = vand.u32 2147483647, %v1148
    %vm1159 = vcmp.eq.f32.partialorder %v1158, 8.507059e+37
    %v1160 = vand.u32 %v1148, 2147483648
    %v1161 = vor.u32 1.1754944e-38, %v1160
    %v1162 = vsel %vm1159, %v1161, %v1157
    %v1163 = vmul.f32 1.0, %v1162
    %v1164 = vadd.f32 %v1163, %v1163
    %v1165 = vsub.f32 %v1164, 1.0
    %v1166 = vsel %vm109, %v1165, %v1163
    %v1168 = vrot.slane %v1035, 6
    %v1170 = vmul.f32 %v1166, %v1168
    %1172 = vrot.lane.b32.xlu0 %v1166, 64
    %v1173 = vpop.permute.xlu0 %1172
    %v1175 = vmul.f32 %v1166, %v1173
    %1177 = vrot.lane.b32.xlu0 %v1175, 32
    %v1178 = vpop.permute.xlu0 %1177
    %v1180 = vadd.f32 %v1170, %v1178
    %v1181 = vtanh.pop %v1180
    %1183 = vrot.lane.b32.xlu0 %v1181, 64
    %v1184 = vpop.permute.xlu0 %1183
    %v1186 = vmul.f32 %v1166, %v1184
    %v1187 = vpack.c.bf16 %v1186, %v1186
    %v1189 = vrot.slane %v1187, 3
    %1190 = vrot.lane.b32.xlu0 %v1189, 32
    %v1191 = vpop.permute.xlu0 %1190
    %v1193 = vsel %vm179, %v1191, 0
    %1195 = vmatpush.bf16.msra.mxu0 0
    %1196 = vmatpush.bf16.msra.mxu0 0
    %1197 = vmatpush.bf16.msra.mxu0 0
    %1198 = vmatpush.bf16.msra.mxu0 0
    %1199 = vmatpush.bf16.msra.mxu0 0
    %1200 = vmatpush.bf16.msra.mxu0 0
    %1201 = vmatpush.bf16.msra.mxu0 %v174
    %1202 = vmatpush.bf16.msra.mxu0 %v172
    %1203 = vmatmul.bf16.gmra.mxu0 %v1193
    %v1204 = vpop.f32.mrf.mxu0
    %v1205 = vadd.f32 0.0, %v1204
    %v1206 = vpop.f32.mrf.mxu0
    %1207 = vdwg.mxu0
    %v1208 = vpack.c.bf16 %v1138, %v1138
    %1210 = vrot.lane.b32.xlu0 %v1208, 104
    %v1211 = vpop.permute.xlu0 %1210
    %v1213 = vsel %vm209, %v1211, 0
    %1215 = vmatpush.bf16.msra.mxu0 0
    %1216 = vmatpush.bf16.msra.mxu0 0
    %1217 = vmatpush.bf16.msra.mxu0 0
    %1218 = vmatpush.bf16.msra.mxu0 0
    %1219 = vmatpush.bf16.msra.mxu0 0
    %1220 = vmatpush.bf16.msra.mxu0 0
    %1221 = vmatpush.bf16.msra.mxu0 0
    %1222 = vmatpush.bf16.msra.mxu0 %v215
    %1223 = vmatmul.bf16.gmra.mxu0 %v1213
    %v1224 = vpop.f32.mrf.mxu0
    %v1225 = vadd.f32 0.0, %v1224
    %v1226 = vpop.f32.mrf.mxu0
    %1227 = vdwg.mxu0
    %v1228 = vadd.f32 %v1205, %v1225
    %v1229 = vadd.f32 %v1228, %v71
    %v1230 = vadd.f32 %v1229, %v1229
    %v1231 = vsel %vm112, %v1230, %v1229
    %v1232 = vxor.u32 %v1231, 2147483648
    %v1233 = vmul.f32 %v1232, 1.442695
    %v1234 = vpow.pop %v1233
    %v1235 = vadd.f32 %v1234, 1.0
    %v1236 = vrcp.pop %v1235
    %v1237 = vmul.f32 %v1235, %v1236
    %v1238 = vsub.f32 1.0, %v1237
    %v1239 = vmul.f32 %v1236, %v1238
    %v1240 = vadd.f32 %v1236, %v1239
    %vm1241 = vweird.f32 %v1235
    %vm1242 = vweird.f32 %v1236
    %vm1243 = vmor %vm1241, %vm1242
    %v1244 = vsel %vm1243, %v1236, %v1240
    %v1245 = vand.u32 2147483647, %v1235
    %vm1246 = vcmp.eq.f32.partialorder %v1245, 8.507059e+37
    %v1247 = vand.u32 %v1235, 2147483648
    %v1248 = vor.u32 1.1754944e-38, %v1247
    %v1249 = vsel %vm1246, %v1248, %v1244
    %v1250 = vmul.f32 1.0, %v1249
    %v1251 = vadd.f32 %v1250, %v1250
    %v1252 = vsub.f32 %v1251, 1.0
    %v1253 = vsel %vm112, %v1252, %v1250
    %v1254 = vmul.f32 %v1253, %v1132
    %1256 = vrot.lane.b32.xlu0 %v1253, 112
    %v1257 = vpop.permute.xlu0 %1256
    %v1259 = vmul.f32 %v1253, %v1257
    %1261 = vrot.lane.b32.xlu0 %v1259, 8
    %v1262 = vpop.permute.xlu0 %1261
    %v1264 = vadd.f32 %v1254, %v1262
    %v1265 = vtanh.pop %v1264
    %1267 = vrot.lane.b32.xlu0 %v1265, 16
    %v1268 = vpop.permute.xlu0 %1267
    %v1270 = vmul.f32 %v1253, %v1268
    %v1271 = vpack.c.bf16 %v1270, %v1270
    %v1272 = vperm.slane %v72, 0
    %1274 = vrot.lane.b32.xlu0 %v1271, 104
    %v1275 = vpop.permute.xlu0 %1274
    %v1277 = vsel %vm209, %v1275, 0
    %v1280 = vsel %vm213, %v68, 0
    %1282 = vmatpush.bf16.msra.mxu0 0
    %1283 = vmatpush.bf16.msra.mxu0 0
    %1284 = vmatpush.bf16.msra.mxu0 0
    %1285 = vmatpush.bf16.msra.mxu0 0
    %1286 = vmatpush.bf16.msra.mxu0 0
    %1287 = vmatpush.bf16.msra.mxu0 0
    %1288 = vmatpush.bf16.msra.mxu0 0
    %1289 = vmatpush.bf16.msra.mxu0 %v1280
    %1290 = vmatmul.bf16.gmra.mxu0 %v1277
    %v1291 = vpop.f32.mrf.mxu0
    %v1292 = vadd.f32 %v1272, %v1291
    %v1293 = vpop.f32.mrf.mxu0
    %1294 = vdwg.mxu0
    %vm1295 = vcmask 58368
    %1296 = vst.msk [vmem:[#allocation8] sm:$0x3] %vm1295, %v1292
    // Predicated region
    $region26: #{tpu_custom_call.1} parent=1 // pred_check
      _
    $region27: #{tpu_custom_call.1} parent=1 // pred_check_branch
      %1298 = sbr.rel (0) target = $region29
    $region28: #{tpu_custom_call.1} parent=1 // pred_region
      %1300 = vsyncadd [#allocation4], 0
      %s1302 = sshll.u32 [#allocation8], 4
      %s1303 = int_to_ptr.vmem [resolvable:$true] %s1302
      %s1304 = sshll.u32 %s3, 4
      %s1305 = int_to_ptr.hbm [resolvable:$true] %s1304
      %1307 = dma.vmem_to_hbm [thread:$0]  %s1303, 32, %s1305, [#allocation4]
    $region29: #{tpu_custom_call.1} parent=1 // pred_fallthru
      _
    // Predicated region
    $region30: #{tpu_custom_call.1} parent=1 // pred_check
      _
    $region31: #{tpu_custom_call.1} parent=1 // pred_check_branch
      %1309 = sbr.rel (0) target = $region33
    $region32: #{tpu_custom_call.1} parent=1 // pred_region
      %1311 = dma.done [#allocation4], 32
    $region33: #{tpu_custom_call.1} parent=1 // pred_fallthru
      _
    %1312 = vsyncpa [#allocation3], 1
    %1313 = vsyncpa [#allocation6], 1
    %1314 = vsyncpa [#allocation4], 1

</llo_original>
